<compile_context>
chip_gen: v5e
topology: v5e:2x2
jax: 0.10.0
libtpu: 0.0.40
codegen_flags: <defaults>
</compile_context>

<pallas_src>
import jax
import jax.numpy as jnp
import numpy as np
from jax.experimental import pallas as pl
from jax.experimental.pallas import tpu as pltpu

# Wrapper-side constant folding and the pure-JAX reference use full f32 matmuls.
jax.config.update("jax_default_matmul_precision", "highest")


def rfq_critic_kernel(x_ref, a_ref, c_ref, w_ref, out_ref):
    # x_ref  : (TB, SA)   concatenated [states, actions] batch tile
    # a_ref  : (SA, 2F)   folded embed->fourier weights, branches packed on lanes
    # c_ref  : (1, 2F)    folded biases
    # w_ref  : (1, 2F)    [sqrt(F)*w_out1 | sqrt(F)*w_out2] packed on lanes
    # out_ref: (TB, 2)    column 0 = output1, column 1 = output2
    x = x_ref[...]                                   # (TB, SA) f32
    a = a_ref[...]                                   # (SA, 2F) f32
    two_f = a.shape[-1]
    f = two_f // 2

    # Pre-activations: K = SA (= 4) contraction as statically-unrolled VPU FMAs
    # (exact f32, no MXU pass, no transpose).
    pre = c_ref[...]                                 # (1, 2F) -> broadcasts
    for k in range(x.shape[-1]):
        pre = pre + x[:, k:k + 1] * a[k:k + 1, :]    # (TB, 2F)

    # cos on the EUP, then a single elementwise mul against the packed head
    # weights; each head is a half-width lane reduction (branches never mix
    # because they occupy disjoint lane halves).
    prod = jnp.cos(pre) * w_ref[...]                 # (TB, 2F)
    out0 = jnp.sum(prod[:, :f], axis=-1, keepdims=True)   # (TB, 1)
    out1 = jnp.sum(prod[:, f:], axis=-1, keepdims=True)   # (TB, 1)
    out_ref[...] = jnp.concatenate([out0, out1], axis=-1)  # (TB, 2)


def rfq_critic_forward(states, actions, params, *, block_b=256):
    (w_embed, b_embed, w_f1, b_f1, w_f2, b_f2, w_out1, w_out2) = params
    n_neurons = w_f1.shape[0]
    sa_dim = w_embed.shape[1]
    hi = jax.lax.Precision.HIGHEST

    # ---- constant folding (wrapper-side, loss-free linear algebra) ----
    # fourier_i(embed(z)) = z @ (We^T @ Wf_i^T) + (be @ Wf_i^T + bf_i)
    a1 = jnp.dot(w_embed.T, w_f1.T, precision=hi)               # (sa, F)
    a2 = jnp.dot(w_embed.T, w_f2.T, precision=hi)               # (sa, F)
    c1 = jnp.dot(b_embed, w_f1.T, precision=hi) + b_f1          # (F,)
    c2 = jnp.dot(b_embed, w_f2.T, precision=hi) + b_f2          # (F,)
    a_packed = jnp.concatenate([a1, a2], axis=1).astype(jnp.float32)   # (sa, 2F)
    c_packed = jnp.concatenate([c1, c2])[None, :].astype(jnp.float32)  # (1, 2F)

    # Heads: fold the div-by-(1/sqrt(F)) scale into the weights and pack both
    # heads on the lane axis (disjoint halves -> no cross-branch mixing).
    scale = float(np.sqrt(n_neurons))
    w_packed = jnp.concatenate(
        [scale * w_out1[0], scale * w_out2[0]])[None, :].astype(jnp.float32)  # (1, 2F)

    # ---- batch input ----
    x = jnp.concatenate([states, actions], axis=-1).astype(jnp.float32)  # (B, sa)
    b = x.shape[0]

    # Pick the batch tile: multiple of 8 sublanes, clamped to the padded batch.
    b8 = -(-b // 8) * 8
    tb = max(8, (min(block_b, b8) // 8) * 8)
    b_pad = -(-b // tb) * tb
    if b_pad != b:
        x = jnp.pad(x, ((0, b_pad - b), (0, 0)))

    two_f = 2 * n_neurons
    out = pl.pallas_call(
        rfq_critic_kernel,
        out_shape=jax.ShapeDtypeStruct((b_pad, 2), jnp.float32),
        grid=(b_pad // tb,),
        in_specs=[
            pl.BlockSpec((tb, sa_dim), lambda i: (i, 0)),      # batch-tiled
            pl.BlockSpec((sa_dim, two_f), lambda i: (0, 0)),   # VMEM-resident
            pl.BlockSpec((1, two_f), lambda i: (0, 0)),        # VMEM-resident
            pl.BlockSpec((1, two_f), lambda i: (0, 0)),        # VMEM-resident
        ],
        out_specs=pl.BlockSpec((tb, 2), lambda i: (i, 0)),
        compiler_params=pltpu.CompilerParams(
            dimension_semantics=("parallel",)),
    )(x, a_packed, c_packed, w_packed)

    out = out[:b]
    return out[:, 0:1], out[:, 1:2]


if __name__ == "__main__":
    # Small, module-consistent shapes (module defaults: sa_dim=4, emb=4, F=256)
    B = 32
    STATE_DIM, ACTION_DIM = 3, 1
    SA_DIM = STATE_DIM + ACTION_DIM
    EMB_DIM = 4
    N_NEURONS = 256

    key = jax.random.PRNGKey(0)
    ks = jax.random.split(key, 10)

    states = jax.random.uniform(ks[0], (B, STATE_DIM), jnp.float32,
                                minval=-1.0, maxval=1.0)
    actions = jax.random.uniform(ks[1], (B, ACTION_DIM), jnp.float32,
                                 minval=-1.0, maxval=1.0)

    # Parameters in torch Linear layout: weight (out, in), y = x @ W^T + b.
    w_embed = jax.random.normal(ks[2], (EMB_DIM, SA_DIM), jnp.float32) * 0.5
    b_embed = jax.random.normal(ks[3], (EMB_DIM,), jnp.float32) * 0.1
    w_f1 = jax.random.normal(ks[4], (N_NEURONS, EMB_DIM), jnp.float32)          # init.normal_
    b_f1 = jax.random.uniform(ks[5], (N_NEURONS,), jnp.float32,
                              minval=0.0, maxval=2.0 * np.pi)                   # init.uniform_(0, 2pi)
    w_f2 = jax.random.normal(ks[6], (N_NEURONS, EMB_DIM), jnp.float32)
    b_f2 = jax.random.uniform(ks[7], (N_NEURONS,), jnp.float32,
                              minval=0.0, maxval=2.0 * np.pi)
    w_out1 = jax.random.normal(ks[8], (1, N_NEURONS), jnp.float32) / np.sqrt(N_NEURONS)
    w_out2 = jax.random.normal(ks[9], (1, N_NEURONS), jnp.float32) / np.sqrt(N_NEURONS)
    # output1/output2 biases are frozen at zero in the module -> exactly omitted.

    params = (w_embed, b_embed, w_f1, b_f1, w_f2, b_f2, w_out1, w_out2)

    out1, out2 = rfq_critic_forward(states, actions, params)
    out1, out2 = jax.block_until_ready((out1, out2))

    # Pure-JAX reference mirroring the torch forward exactly (no folding).
    x = jnp.concatenate([states, actions], axis=-1)
    e = x @ w_embed.T + b_embed
    p1 = e @ w_f1.T + b_f1
    p2 = e @ w_f2.T + b_f2
    x1 = jnp.cos(p1) / (1.0 / np.sqrt(N_NEURONS))
    x2 = jnp.cos(p2) / (1.0 / np.sqrt(N_NEURONS))
    ref1 = x1 @ w_out1.T
    ref2 = x2 @ w_out2.T

    assert jnp.allclose(out1, ref1, rtol=1e-4, atol=1e-4)
    assert jnp.allclose(out2, ref2, rtol=1e-4, atol=1e-4)
    print("KERNEL_OK")
</pallas_src>

<mosaic_0001>
module attributes {stable_mosaic.version = 11 : i64} {
  func.func @rfq_critic_kernel(%arg0: i32, %arg1: memref<32x4xf32, #tpu.memory_space<vmem>>, %arg2: memref<4x512xf32, #tpu.memory_space<vmem>>, %arg3: memref<1x512xf32, #tpu.memory_space<vmem>>, %arg4: memref<1x512xf32, #tpu.memory_space<vmem>>, %arg5: memref<32x2xf32, #tpu.memory_space<vmem>>) attributes {dimension_semantics = [#tpu.dimension_semantics<parallel>], iteration_bounds = array<i64: 1>, scalar_prefetch = 0 : i64, scratch_operands = 0 : i64, tpu.core_type = #tpu.core_type<tc>, window_params = [{transform_indices = @transform_0, window_bounds = array<i64: 32, 4>}, {pipeline_mode = #tpu.pipeline_mode<synchronous>, transform_indices = @transform_1, window_bounds = array<i64: 4, 512>}, {pipeline_mode = #tpu.pipeline_mode<synchronous>, transform_indices = @transform_2, window_bounds = array<i64: 1, 512>}, {pipeline_mode = #tpu.pipeline_mode<synchronous>, transform_indices = @transform_3, window_bounds = array<i64: 1, 512>}, {transform_indices = @transform_4, window_bounds = array<i64: 32, 2>}]} {
    %c0 = arith.constant 0 : index
    %c0_0 = arith.constant 0 : index
    %0 = vector.load %arg1[%c0, %c0_0] : memref<32x4xf32, #tpu.memory_space<vmem>>, vector<32x4xf32>
    %c0_1 = arith.constant 0 : index
    %c0_2 = arith.constant 0 : index
    %1 = vector.load %arg2[%c0_1, %c0_2] : memref<4x512xf32, #tpu.memory_space<vmem>>, vector<4x512xf32>
    %c0_3 = arith.constant 0 : index
    %c0_4 = arith.constant 0 : index
    %2 = vector.load %arg3[%c0_3, %c0_4] : memref<1x512xf32, #tpu.memory_space<vmem>>, vector<1x512xf32>
    %3 = vector.extract_strided_slice %0 {offsets = [0, 0], sizes = [32, 1], strides = [1, 1]} : vector<32x4xf32> to vector<32x1xf32>
    %4 = vector.extract_strided_slice %1 {offsets = [0, 0], sizes = [1, 512], strides = [1, 1]} : vector<4x512xf32> to vector<1x512xf32>
    %5 = vector.broadcast %3 : vector<32x1xf32> to vector<32x512xf32>
    %6 = vector.broadcast %4 : vector<1x512xf32> to vector<32x512xf32>
    %7 = arith.mulf %5, %6 : vector<32x512xf32>
    %8 = vector.broadcast %2 : vector<1x512xf32> to vector<32x512xf32>
    %9 = arith.addf %8, %7 : vector<32x512xf32>
    %10 = vector.extract_strided_slice %0 {offsets = [0, 1], sizes = [32, 1], strides = [1, 1]} : vector<32x4xf32> to vector<32x1xf32>
    %11 = vector.extract_strided_slice %1 {offsets = [1, 0], sizes = [1, 512], strides = [1, 1]} : vector<4x512xf32> to vector<1x512xf32>
    %12 = vector.broadcast %10 : vector<32x1xf32> to vector<32x512xf32>
    %13 = vector.broadcast %11 : vector<1x512xf32> to vector<32x512xf32>
    %14 = arith.mulf %12, %13 : vector<32x512xf32>
    %15 = arith.addf %9, %14 : vector<32x512xf32>
    %16 = vector.extract_strided_slice %0 {offsets = [0, 2], sizes = [32, 1], strides = [1, 1]} : vector<32x4xf32> to vector<32x1xf32>
    %17 = vector.extract_strided_slice %1 {offsets = [2, 0], sizes = [1, 512], strides = [1, 1]} : vector<4x512xf32> to vector<1x512xf32>
    %18 = vector.broadcast %16 : vector<32x1xf32> to vector<32x512xf32>
    %19 = vector.broadcast %17 : vector<1x512xf32> to vector<32x512xf32>
    %20 = arith.mulf %18, %19 : vector<32x512xf32>
    %21 = arith.addf %15, %20 : vector<32x512xf32>
    %22 = vector.extract_strided_slice %0 {offsets = [0, 3], sizes = [32, 1], strides = [1, 1]} : vector<32x4xf32> to vector<32x1xf32>
    %23 = vector.extract_strided_slice %1 {offsets = [3, 0], sizes = [1, 512], strides = [1, 1]} : vector<4x512xf32> to vector<1x512xf32>
    %24 = vector.broadcast %22 : vector<32x1xf32> to vector<32x512xf32>
    %25 = vector.broadcast %23 : vector<1x512xf32> to vector<32x512xf32>
    %26 = arith.mulf %24, %25 : vector<32x512xf32>
    %27 = arith.addf %21, %26 : vector<32x512xf32>
    %28 = math.cos %27 : vector<32x512xf32>
    %c0_5 = arith.constant 0 : index
    %c0_6 = arith.constant 0 : index
    %29 = vector.load %arg4[%c0_5, %c0_6] : memref<1x512xf32, #tpu.memory_space<vmem>>, vector<1x512xf32>
    %30 = vector.broadcast %29 : vector<1x512xf32> to vector<32x512xf32>
    %31 = arith.mulf %28, %30 : vector<32x512xf32>
    %32 = vector.extract_strided_slice %31 {offsets = [0, 0], sizes = [32, 256], strides = [1, 1]} : vector<32x512xf32> to vector<32x256xf32>
    %cst = arith.constant dense<0.000000e+00> : vector<32xf32>
    %33 = vector.multi_reduction <add>, %32, %cst [1] : vector<32x256xf32> to vector<32xf32>
    %34 = vector.shape_cast %33 : vector<32xf32> to vector<32x1xf32>
    %35 = vector.extract_strided_slice %31 {offsets = [0, 256], sizes = [32, 256], strides = [1, 1]} : vector<32x512xf32> to vector<32x256xf32>
    %cst_7 = arith.constant dense<0.000000e+00> : vector<32xf32>
    %36 = vector.multi_reduction <add>, %35, %cst_7 [1] : vector<32x256xf32> to vector<32xf32>
    %37 = vector.shape_cast %36 : vector<32xf32> to vector<32x1xf32>
    %38 = tpu.concatenate %34, %37 in 1 : vector<32x1xf32>, vector<32x1xf32> -> vector<32x2xf32>
    %c0_8 = arith.constant 0 : index
    %c0_9 = arith.constant 0 : index
    %39 = vector.load %arg5[%c0_8, %c0_9] : memref<32x2xf32, #tpu.memory_space<vmem>>, vector<32x2xf32>
    tpu.vector_store %arg5[%c0_8, %c0_9], %38 {strides = array<i32>} : memref<32x2xf32, #tpu.memory_space<vmem>>, vector<32x2xf32>,
    return
  }
  func.func @transform_0(%arg0: i32) -> (i32, i32) {
    %c0_i32 = arith.constant 0 : i32
    %c0_i32_0 = arith.constant 0 : i32
    return %arg0, %c0_i32 : i32, i32
  }
  func.func @transform_1(%arg0: i32) -> (i32, i32) {
    %c0_i32 = arith.constant 0 : i32
    %c0_i32_0 = arith.constant 0 : i32
    %c0_i32_1 = arith.constant 0 : i32
    return %c0_i32, %c0_i32_0 : i32, i32
  }
  func.func @transform_2(%arg0: i32) -> (i32, i32) {
    %c0_i32 = arith.constant 0 : i32
    %c0_i32_0 = arith.constant 0 : i32
    %c0_i32_1 = arith.constant 0 : i32
    return %c0_i32, %c0_i32_0 : i32, i32
  }
  func.func @transform_3(%arg0: i32) -> (i32, i32) {
    %c0_i32 = arith.constant 0 : i32
    %c0_i32_0 = arith.constant 0 : i32
    %c0_i32_1 = arith.constant 0 : i32
    return %c0_i32, %c0_i32_0 : i32, i32
  }
  func.func @transform_4(%arg0: i32) -> (i32, i32) {
    %c0_i32 = arith.constant 0 : i32
    %c0_i32_0 = arith.constant 0 : i32
    return %arg0, %c0_i32 : i32, i32
  }
}

</mosaic_0001>

<llo_original>
// kernel: tpu_custom_call.1
$region0: #{tpu_custom_call.1}
  #allocation0 [shape = 'u32[]', space=smem, size = 0x4, offset = 0x4, fixed_abs, tag = 'smem constant byte address 0x4 - core index']
  #allocation1 [shape = 'u32[72,128]{1,0:T(1,128)}', space=vmem, size = 0x9000, scoped, tag = 'internal scratch']
  %s0 = inlined_call_operand.vmem [shape: f32[32,4], index: 0, kind: input, shape index: {}]
  %s1 = inlined_call_operand.vmem [shape: f32[4,512], index: 1, kind: input, shape index: {}]
  %s2 = inlined_call_operand.vmem [shape: f32[1,512], index: 2, kind: input, shape index: {}]
  %s3 = inlined_call_operand.vmem [shape: f32[1,512], index: 3, kind: input, shape index: {}]
  %s4 = inlined_call_operand.vmem [shape: f32[32,2], index: 4, kind: output, shape index: {}]
  %s5 = sld [smem:[#allocation0]]
  $region26: #{tpu_custom_call.1} parent=0
    _
  %s7 = ssub.s32 1, %s5
  %s8 = scalar_select 0, %s7, %s5
  // Predicated region
  $region2: #{tpu_custom_call.1} parent=0 // pred_check
    _
  $region3: #{tpu_custom_call.1} parent=0 // pred_check_branch
    %10 = sbr.rel (0) target = $region5
  $region4: #{tpu_custom_call.1} parent=0 // pred_region
    _
  $region5: #{tpu_custom_call.1} parent=0 // pred_fallthru
    _
  // Predicated region
  $region6: #{tpu_custom_call.1} parent=0 // pred_check
    _
  $region7: #{tpu_custom_call.1} parent=0 // pred_check_branch
    %12 = sbr.rel (0) target = $region9
  $region8: #{tpu_custom_call.1} parent=0 // pred_region
    _
  $region9: #{tpu_custom_call.1} parent=0 // pred_fallthru
    _
  // Predicated region
  $region10: #{tpu_custom_call.1} parent=0 // pred_check
    _
  $region11: #{tpu_custom_call.1} parent=0 // pred_check_branch
    %14 = sbr.rel (0) target = $region13
  $region12: #{tpu_custom_call.1} parent=0 // pred_region
    _
  $region13: #{tpu_custom_call.1} parent=0 // pred_fallthru
    _
  // Predicated region
  $region14: #{tpu_custom_call.1} parent=0 // pred_check
    _
  $region15: #{tpu_custom_call.1} parent=0 // pred_check_branch
    %16 = sbr.rel (0) target = $region17
  $region16: #{tpu_custom_call.1} parent=0 // pred_region
    _
  $region17: #{tpu_custom_call.1} parent=0 // pred_fallthru
    _
  %v17 = vld [vmem:[%s0] sm:$0xff]
  %v18 = vld [vmem:[%s0 + $0x8] sm:$0xff]
  %v19 = vld [vmem:[%s0 + $0x10] sm:$0xff]
  %v20 = vld [vmem:[%s0 + $0x18] sm:$0xff]
  %v21 = vld [vmem:[%s1] sm:$0xff]
  %v22 = vld [vmem:[%s1 + $0x8] sm:$0xff]
  %v23 = vld [vmem:[%s2] sm:$0xf]
  %25 = vset.pattern.permute.xlu0 0
  %26 = vperm.xlu0 %25, %v17
  %v27 = vpop.permute.xlu0 %26
  %30 = vset.pattern.permute.xlu0 0
  %31 = vperm.xlu0 %30, %v18
  %v32 = vpop.permute.xlu0 %31
  %35 = vset.pattern.permute.xlu0 0
  %36 = vperm.xlu0 %35, %v19
  %v37 = vpop.permute.xlu0 %36
  %40 = vset.pattern.permute.xlu0 0
  %41 = vperm.xlu0 %40, %v20
  %v42 = vpop.permute.xlu0 %41
  %v46 = vperm.slane %v21, 0
  %v47 = vperm.slane %v21, 4
  %v48 = vperm.slane %v22, 0
  %v49 = vperm.slane %v22, 4
  %v54 = vperm.slane %v46, 0
  %v55 = vperm.slane %v47, 0
  %v56 = vperm.slane %v48, 0
  %v57 = vperm.slane %v49, 0
  %v58 = vmul.f32 %v27, %v54
  %v59 = vmul.f32 %v27, %v55
  %v60 = vmul.f32 %v27, %v56
  %v61 = vmul.f32 %v27, %v57
  %v62 = vmul.f32 %v32, %v54
  %v63 = vmul.f32 %v32, %v55
  %v64 = vmul.f32 %v32, %v56
  %v65 = vmul.f32 %v32, %v57
  %v66 = vmul.f32 %v37, %v54
  %v67 = vmul.f32 %v37, %v55
  %v68 = vmul.f32 %v37, %v56
  %v69 = vmul.f32 %v37, %v57
  %v70 = vmul.f32 %v42, %v54
  %v71 = vmul.f32 %v42, %v55
  %v72 = vmul.f32 %v42, %v56
  %v73 = vmul.f32 %v42, %v57
  %v75 = vperm.slane %v23, 0
  %v76 = vperm.slane %v23, 1
  %v77 = vperm.slane %v23, 2
  %v78 = vperm.slane %v23, 3
  %v83 = vadd.f32 %v75, %v58
  %v84 = vadd.f32 %v76, %v59
  %v85 = vadd.f32 %v77, %v60
  %v86 = vadd.f32 %v78, %v61
  %v87 = vadd.f32 %v75, %v62
  %v88 = vadd.f32 %v76, %v63
  %v89 = vadd.f32 %v77, %v64
  %v90 = vadd.f32 %v78, %v65
  %v91 = vadd.f32 %v75, %v66
  %v92 = vadd.f32 %v76, %v67
  %v93 = vadd.f32 %v77, %v68
  %v94 = vadd.f32 %v78, %v69
  %v95 = vadd.f32 %v75, %v70
  %v96 = vadd.f32 %v76, %v71
  %v97 = vadd.f32 %v77, %v72
  %v98 = vadd.f32 %v78, %v73
  %99 = vset.pattern.permute.xlu0 1
  %100 = vperm.xlu0 %99, %v17
  %v101 = vpop.permute.xlu0 %100
  %103 = vset.pattern.permute.xlu0 1
  %104 = vperm.xlu0 %103, %v18
  %v105 = vpop.permute.xlu0 %104
  %107 = vset.pattern.permute.xlu0 1
  %108 = vperm.xlu0 %107, %v19
  %v109 = vpop.permute.xlu0 %108
  %111 = vset.pattern.permute.xlu0 1
  %112 = vperm.xlu0 %111, %v20
  %v113 = vpop.permute.xlu0 %112
  %v115 = vperm.slane %v21, 1
  %v116 = vperm.slane %v21, 5
  %v117 = vperm.slane %v22, 1
  %v118 = vperm.slane %v22, 5
  %v123 = vperm.slane %v115, 1
  %v124 = vperm.slane %v116, 1
  %v125 = vperm.slane %v117, 1
  %v126 = vperm.slane %v118, 1
  %v127 = vmul.f32 %v101, %v123
  %v128 = vmul.f32 %v101, %v124
  %v129 = vmul.f32 %v101, %v125
  %v130 = vmul.f32 %v101, %v126
  %v131 = vmul.f32 %v105, %v123
  %v132 = vmul.f32 %v105, %v124
  %v133 = vmul.f32 %v105, %v125
  %v134 = vmul.f32 %v105, %v126
  %v135 = vmul.f32 %v109, %v123
  %v136 = vmul.f32 %v109, %v124
  %v137 = vmul.f32 %v109, %v125
  %v138 = vmul.f32 %v109, %v126
  %v139 = vmul.f32 %v113, %v123
  %v140 = vmul.f32 %v113, %v124
  %v141 = vmul.f32 %v113, %v125
  %v142 = vmul.f32 %v113, %v126
  %v143 = vadd.f32 %v83, %v127
  %v144 = vadd.f32 %v84, %v128
  %v145 = vadd.f32 %v85, %v129
  %v146 = vadd.f32 %v86, %v130
  %v147 = vadd.f32 %v87, %v131
  %v148 = vadd.f32 %v88, %v132
  %v149 = vadd.f32 %v89, %v133
  %v150 = vadd.f32 %v90, %v134
  %v151 = vadd.f32 %v91, %v135
  %v152 = vadd.f32 %v92, %v136
  %v153 = vadd.f32 %v93, %v137
  %v154 = vadd.f32 %v94, %v138
  %v155 = vadd.f32 %v95, %v139
  %v156 = vadd.f32 %v96, %v140
  %v157 = vadd.f32 %v97, %v141
  %v158 = vadd.f32 %v98, %v142
  %159 = vset.pattern.permute.xlu0 2
  %160 = vperm.xlu0 %159, %v17
  %v161 = vpop.permute.xlu0 %160
  %163 = vset.pattern.permute.xlu0 2
  %164 = vperm.xlu0 %163, %v18
  %v165 = vpop.permute.xlu0 %164
  %167 = vset.pattern.permute.xlu0 2
  %168 = vperm.xlu0 %167, %v19
  %v169 = vpop.permute.xlu0 %168
  %171 = vset.pattern.permute.xlu0 2
  %172 = vperm.xlu0 %171, %v20
  %v173 = vpop.permute.xlu0 %172
  %v175 = vperm.slane %v21, 2
  %v176 = vperm.slane %v21, 6
  %v177 = vperm.slane %v22, 2
  %v178 = vperm.slane %v22, 6
  %v183 = vperm.slane %v175, 2
  %v184 = vperm.slane %v176, 2
  %v185 = vperm.slane %v177, 2
  %v186 = vperm.slane %v178, 2
  %v187 = vmul.f32 %v161, %v183
  %v188 = vmul.f32 %v161, %v184
  %v189 = vmul.f32 %v161, %v185
  %v190 = vmul.f32 %v161, %v186
  %v191 = vmul.f32 %v165, %v183
  %v192 = vmul.f32 %v165, %v184
  %v193 = vmul.f32 %v165, %v185
  %v194 = vmul.f32 %v165, %v186
  %v195 = vmul.f32 %v169, %v183
  %v196 = vmul.f32 %v169, %v184
  %v197 = vmul.f32 %v169, %v185
  %v198 = vmul.f32 %v169, %v186
  %v199 = vmul.f32 %v173, %v183
  %v200 = vmul.f32 %v173, %v184
  %v201 = vmul.f32 %v173, %v185
  %v202 = vmul.f32 %v173, %v186
  %v203 = vadd.f32 %v143, %v187
  %v204 = vadd.f32 %v144, %v188
  %v205 = vadd.f32 %v145, %v189
  %v206 = vadd.f32 %v146, %v190
  %v207 = vadd.f32 %v147, %v191
  %v208 = vadd.f32 %v148, %v192
  %v209 = vadd.f32 %v149, %v193
  %v210 = vadd.f32 %v150, %v194
  %v211 = vadd.f32 %v151, %v195
  %v212 = vadd.f32 %v152, %v196
  %v213 = vadd.f32 %v153, %v197
  %v214 = vadd.f32 %v154, %v198
  %v215 = vadd.f32 %v155, %v199
  %v216 = vadd.f32 %v156, %v200
  %v217 = vadd.f32 %v157, %v201
  %v218 = vadd.f32 %v158, %v202
  %219 = vset.pattern.permute.xlu0 3
  %220 = vperm.xlu0 %219, %v17
  %v221 = vpop.permute.xlu0 %220
  %223 = vset.pattern.permute.xlu0 3
  %224 = vperm.xlu0 %223, %v18
  %v225 = vpop.permute.xlu0 %224
  %227 = vset.pattern.permute.xlu0 3
  %228 = vperm.xlu0 %227, %v19
  %v229 = vpop.permute.xlu0 %228
  %231 = vset.pattern.permute.xlu0 3
  %232 = vperm.xlu0 %231, %v20
  %v233 = vpop.permute.xlu0 %232
  %v235 = vperm.slane %v21, 3
  %v236 = vperm.slane %v21, 7
  %v237 = vperm.slane %v22, 3
  %v238 = vperm.slane %v22, 7
  %v243 = vperm.slane %v235, 3
  %v244 = vperm.slane %v236, 3
  %v245 = vperm.slane %v237, 3
  %v246 = vperm.slane %v238, 3
  %v247 = vmul.f32 %v221, %v243
  %v248 = vmul.f32 %v221, %v244
  %v249 = vmul.f32 %v221, %v245
  %v250 = vmul.f32 %v221, %v246
  %v251 = vmul.f32 %v225, %v243
  %v252 = vmul.f32 %v225, %v244
  %v253 = vmul.f32 %v225, %v245
  %v254 = vmul.f32 %v225, %v246
  %v255 = vmul.f32 %v229, %v243
  %v256 = vmul.f32 %v229, %v244
  %v257 = vmul.f32 %v229, %v245
  %v258 = vmul.f32 %v229, %v246
  %v259 = vmul.f32 %v233, %v243
  %v260 = vmul.f32 %v233, %v244
  %v261 = vmul.f32 %v233, %v245
  %v262 = vmul.f32 %v233, %v246
  %v263 = vadd.f32 %v203, %v247
  %v264 = vadd.f32 %v204, %v248
  %v265 = vadd.f32 %v205, %v249
  %v266 = vadd.f32 %v206, %v250
  %v267 = vadd.f32 %v207, %v251
  %v268 = vadd.f32 %v208, %v252
  %v269 = vadd.f32 %v209, %v253
  %v270 = vadd.f32 %v210, %v254
  %v271 = vadd.f32 %v211, %v255
  %v272 = vadd.f32 %v212, %v256
  %v273 = vadd.f32 %v213, %v257
  %v274 = vadd.f32 %v214, %v258
  %v275 = vadd.f32 %v215, %v259
  %v276 = vadd.f32 %v216, %v260
  %v277 = vadd.f32 %v217, %v261
  %v278 = vadd.f32 %v218, %v262
  %v279 = vand.u32 2147483647, %v263
  %vm280 = vcmp.le.f32.partialorder %v279, 0.7853982
  %vm281 = vcmp.lt.s32.totalorder %v263, 0
  %v282 = vand.u32 %v263, 2139095040
  %v283 = vshrl.u32 %v282, 23
  %v284 = vsub.s32 %v283, 127
  %v285 = vand.u32 2147483647, %v263
  %v286 = vand.u32 %v285, 8388607
  %v287 = vor.u32 %v286, 8388608
  %v288 = vsub.s32 0, %v287
  %v289 = vadd.s32 %v284, 1
  %vm290 = vcmp.gt.s32.totalorder %v289, 0
  %v291 = vsel %vm290, %v289, 0
  %v292 = vshrl.u32 %v291, 5
  %v293 = vand.u32 %v291, 31
  %v294 = vsub.s32 32, %v293
  %v295 = vshrl.u32 683565275, %v294
  %v296 = vshll.u32 683565275, %v293
  %v297 = vshrl.u32 2475754826, %v294
  %v298 = vor.u32 %v296, %v297
  %v299 = vshll.u32 2475754826, %v293
  %v300 = vshrl.u32 2131351028, %v294
  %v301 = vor.u32 %v299, %v300
  %v302 = vshll.u32 2131351028, %v293
  %v303 = vshrl.u32 2102212464, %v294
  %v304 = vor.u32 %v302, %v303
  %v305 = vshll.u32 2102212464, %v293
  %v306 = vshrl.u32 920167782, %v294
  %v307 = vor.u32 %v305, %v306
  %v308 = vshll.u32 920167782, %v293
  %v309 = vshrl.u32 1326507024, %v294
  %v310 = vor.u32 %v308, %v309
  %vm311 = vcmp.lt.s32.totalorder %v292, 1
  %vm312 = vcmp.lt.s32.totalorder %v292, 2
  %vm313 = vcmp.lt.s32.totalorder %v292, 3
  %vm314 = vcmp.lt.s32.totalorder %v292, 4
  %v315 = vsel %vm311, %v295, %v298
  %v316 = vsel %vm314, %v304, 2102212464
  %v317 = vsel %vm313, %v301, %v316
  %v318 = vsel %vm312, %v315, %v317
  %v319 = vsel %vm311, %v298, %v301
  %v320 = vsel %vm314, %v307, 920167782
  %v321 = vsel %vm313, %v304, %v320
  %v322 = vsel %vm312, %v319, %v321
  %v323 = vsel %vm311, %v301, %v304
  %v324 = vsel %vm314, %v310, 1326507024
  %v325 = vsel %vm313, %v307, %v324
  %v326 = vsel %vm312, %v323, %v325
  %v327 = vshll.u32 %v287, 8
  %v328 = vand.u32 %v327, 65535
  %v329 = vshrl.u32 %v327, 16
  %v330 = vand.u32 %v326, 65535
  %v331 = vshrl.u32 %v326, 16
  %v332 = vmul.u32 %v328, %v330
  %v333 = vmul.u32 %v328, %v331
  %v334 = vmul.u32 %v329, %v330
  %v335 = vmul.u32 %v329, %v331
  %v336 = vshll.u32 %v333, 16
  %v337 = vshrl.u32 %v333, 16
  %v338 = vshll.u32 %v334, 16
  %v339 = vshrl.u32 %v334, 16
  %vm340 = vc.u32 %v332, %v336
  %v341 = vsel %vm340, 1, 0
  %v342 = vadd.s32 %v332, %v336
  %v343 = vadd.s32 %v335, %v341
  %vm344 = vc.u32 %v342, %v338
  %v345 = vsel %vm344, 1, 0
  %v346 = vadd.s32 %v342, %v338
  %v347 = vadd.s32 %v343, %v345
  %v348 = vadd.s32 %v347, %v337
  %v349 = vadd.s32 %v348, %v339
  %v350 = vand.u32 %v327, 65535
  %v351 = vshrl.u32 %v327, 16
  %v352 = vand.u32 %v322, 65535
  %v353 = vshrl.u32 %v322, 16
  %v354 = vmul.u32 %v350, %v352
  %v355 = vmul.u32 %v350, %v353
  %v356 = vmul.u32 %v351, %v352
  %v357 = vmul.u32 %v351, %v353
  %v358 = vshll.u32 %v355, 16
  %v359 = vshrl.u32 %v355, 16
  %v360 = vshll.u32 %v356, 16
  %v361 = vshrl.u32 %v356, 16
  %vm362 = vc.u32 %v354, %v358
  %v363 = vsel %vm362, 1, 0
  %v364 = vadd.s32 %v354, %v358
  %v365 = vadd.s32 %v357, %v363
  %vm366 = vc.u32 %v364, %v360
  %v367 = vsel %vm366, 1, 0
  %v368 = vadd.s32 %v364, %v360
  %v369 = vadd.s32 %v365, %v367
  %v370 = vadd.s32 %v369, %v359
  %v371 = vadd.s32 %v370, %v361
  %v372 = vmul.u32 %v327, %v318
  %v373 = vadd.s32 %v349, %v368
  %vm374 = vc.u32 %v349, %v368
  %v375 = vadd.s32 %v371, 1
  %v376 = vsel %vm374, %v375, %v371
  %v377 = vadd.s32 %v372, %v376
  %v378 = vadd.s32 %v377, 536870912
  %v379 = vshrl.u32 %v378, 30
  %v380 = vshll.u32 %v379, 30
  %v381 = vsub.s32 %v377, %v380
  %vm382 = vcmp.lt.s32.totalorder %v381, 0
  %v383 = vsub.s32 0, %v381
  %v384 = vsel %vm382, %v383, %v381
  %v385 = vclz %v384
  %v386 = vsub.s32 %v385, 2
  %vm387 = vcmp.gt.s32.totalorder 0, %v386
  %v388 = vsel %vm387, 0, %v386
  %v389 = vsub.s32 32, %v388
  %v390 = vshll.u32 %v381, %v388
  %v391 = vshrl.u32 %v373, %v389
  %v392 = vor.u32 %v390, %v391
  %v393 = vsub.s32 4294967266, %v388
  %v394 = vadd.s32 %v393, 127
  %v395 = vshll.u32 %v394, 23
  %v396 = vor.u32 4788187, %v395
  %v397 = vand.u32 2147483647, %v396
  %v399 = vcvt.s32.f32 %v392
  %v400 = vmul.f32 %v399, %v397
  %v401 = vxor.u32 %v400, 2147483648
  %v402 = vsel %vm281, %v401, %v400
  %v403 = vsub.s32 4, %v379
  %v404 = vsel %vm281, %v403, %v379
  %v405 = vsel %vm280, %v263, %v402
  %v406 = vsel %vm280, 0, %v404
  %v407 = vmul.f32 %v405, %v405
  %v408 = vmul.f32 %v407, -0.001358992
  %v409 = vadd.f32 %v408, 0.041655596
  %v410 = vmul.f32 %v407, %v409
  %v411 = vadd.f32 %v410, -0.4999988
  %v412 = vmul.f32 %v407, %v411
  %v413 = vadd.f32 1.0, %v412
  %v414 = vmul.f32 %v405, %v405
  %v415 = vmul.f32 %v414, -0.00019511016
  %v416 = vadd.f32 %v415, 0.008332121
  %v417 = vmul.f32 %v414, %v416
  %v418 = vadd.f32 %v417, -0.16666654
  %v419 = vmul.f32 %v414, %v418
  %v420 = vadd.f32 %v419, 1.0
  %v421 = vmul.f32 %v420, %v405
  %vm422 = vweird.f32 %v263
  %v423 = vand.u32 %v406, 3
  %vm424 = vcmp.lt.s32.totalorder %v423, 2
  %vm425 = vcmp.eq.s32.totalorder %v423, 0
  %v426 = vxor.u32 %v421, 2147483648
  %v427 = vsel %vm425, %v413, %v426
  %vm428 = vcmp.eq.s32.totalorder %v423, 2
  %v429 = vxor.u32 %v413, 2147483648
  %v430 = vsel %vm428, %v429, %v421
  %v431 = vsel %vm424, %v427, %v430
  %v432 = vsel %vm422, nan, %v431
  %v433 = vand.u32 2147483647, %v264
  %vm434 = vcmp.le.f32.partialorder %v433, 0.7853982
  %vm435 = vcmp.lt.s32.totalorder %v264, 0
  %v436 = vand.u32 %v264, 2139095040
  %v437 = vshrl.u32 %v436, 23
  %v438 = vsub.s32 %v437, 127
  %v439 = vand.u32 2147483647, %v264
  %v440 = vand.u32 %v439, 8388607
  %v441 = vor.u32 %v440, 8388608
  %v442 = vsub.s32 0, %v441
  %v443 = vadd.s32 %v438, 1
  %vm444 = vcmp.gt.s32.totalorder %v443, 0
  %v445 = vsel %vm444, %v443, 0
  %v446 = vshrl.u32 %v445, 5
  %v447 = vand.u32 %v445, 31
  %v448 = vsub.s32 32, %v447
  %v449 = vshrl.u32 683565275, %v448
  %v450 = vshll.u32 683565275, %v447
  %v451 = vshrl.u32 2475754826, %v448
  %v452 = vor.u32 %v450, %v451
  %v453 = vshll.u32 2475754826, %v447
  %v454 = vshrl.u32 2131351028, %v448
  %v455 = vor.u32 %v453, %v454
  %v456 = vshll.u32 2131351028, %v447
  %v457 = vshrl.u32 2102212464, %v448
  %v458 = vor.u32 %v456, %v457
  %v459 = vshll.u32 2102212464, %v447
  %v460 = vshrl.u32 920167782, %v448
  %v461 = vor.u32 %v459, %v460
  %v462 = vshll.u32 920167782, %v447
  %v463 = vshrl.u32 1326507024, %v448
  %v464 = vor.u32 %v462, %v463
  %vm465 = vcmp.lt.s32.totalorder %v446, 1
  %vm466 = vcmp.lt.s32.totalorder %v446, 2
  %vm467 = vcmp.lt.s32.totalorder %v446, 3
  %vm468 = vcmp.lt.s32.totalorder %v446, 4
  %v469 = vsel %vm465, %v449, %v452
  %v470 = vsel %vm468, %v458, 2102212464
  %v471 = vsel %vm467, %v455, %v470
  %v472 = vsel %vm466, %v469, %v471
  %v473 = vsel %vm465, %v452, %v455
  %v474 = vsel %vm468, %v461, 920167782
  %v475 = vsel %vm467, %v458, %v474
  %v476 = vsel %vm466, %v473, %v475
  %v477 = vsel %vm465, %v455, %v458
  %v478 = vsel %vm468, %v464, 1326507024
  %v479 = vsel %vm467, %v461, %v478
  %v480 = vsel %vm466, %v477, %v479
  %v481 = vshll.u32 %v441, 8
  %v482 = vand.u32 %v481, 65535
  %v483 = vshrl.u32 %v481, 16
  %v484 = vand.u32 %v480, 65535
  %v485 = vshrl.u32 %v480, 16
  %v486 = vmul.u32 %v482, %v484
  %v487 = vmul.u32 %v482, %v485
  %v488 = vmul.u32 %v483, %v484
  %v489 = vmul.u32 %v483, %v485
  %v490 = vshll.u32 %v487, 16
  %v491 = vshrl.u32 %v487, 16
  %v492 = vshll.u32 %v488, 16
  %v493 = vshrl.u32 %v488, 16
  %vm494 = vc.u32 %v486, %v490
  %v495 = vsel %vm494, 1, 0
  %v496 = vadd.s32 %v486, %v490
  %v497 = vadd.s32 %v489, %v495
  %vm498 = vc.u32 %v496, %v492
  %v499 = vsel %vm498, 1, 0
  %v500 = vadd.s32 %v496, %v492
  %v501 = vadd.s32 %v497, %v499
  %v502 = vadd.s32 %v501, %v491
  %v503 = vadd.s32 %v502, %v493
  %v504 = vand.u32 %v481, 65535
  %v505 = vshrl.u32 %v481, 16
  %v506 = vand.u32 %v476, 65535
  %v507 = vshrl.u32 %v476, 16
  %v508 = vmul.u32 %v504, %v506
  %v509 = vmul.u32 %v504, %v507
  %v510 = vmul.u32 %v505, %v506
  %v511 = vmul.u32 %v505, %v507
  %v512 = vshll.u32 %v509, 16
  %v513 = vshrl.u32 %v509, 16
  %v514 = vshll.u32 %v510, 16
  %v515 = vshrl.u32 %v510, 16
  %vm516 = vc.u32 %v508, %v512
  %v517 = vsel %vm516, 1, 0
  %v518 = vadd.s32 %v508, %v512
  %v519 = vadd.s32 %v511, %v517
  %vm520 = vc.u32 %v518, %v514
  %v521 = vsel %vm520, 1, 0
  %v522 = vadd.s32 %v518, %v514
  %v523 = vadd.s32 %v519, %v521
  %v524 = vadd.s32 %v523, %v513
  %v525 = vadd.s32 %v524, %v515
  %v526 = vmul.u32 %v481, %v472
  %v527 = vadd.s32 %v503, %v522
  %vm528 = vc.u32 %v503, %v522
  %v529 = vadd.s32 %v525, 1
  %v530 = vsel %vm528, %v529, %v525
  %v531 = vadd.s32 %v526, %v530
  %v532 = vadd.s32 %v531, 536870912
  %v533 = vshrl.u32 %v532, 30
  %v534 = vshll.u32 %v533, 30
  %v535 = vsub.s32 %v531, %v534
  %vm536 = vcmp.lt.s32.totalorder %v535, 0
  %v537 = vsub.s32 0, %v535
  %v538 = vsel %vm536, %v537, %v535
  %v539 = vclz %v538
  %v540 = vsub.s32 %v539, 2
  %vm541 = vcmp.gt.s32.totalorder 0, %v540
  %v542 = vsel %vm541, 0, %v540
  %v543 = vsub.s32 32, %v542
  %v544 = vshll.u32 %v535, %v542
  %v545 = vshrl.u32 %v527, %v543
  %v546 = vor.u32 %v544, %v545
  %v547 = vsub.s32 4294967266, %v542
  %v548 = vadd.s32 %v547, 127
  %v549 = vshll.u32 %v548, 23
  %v550 = vor.u32 4788187, %v549
  %v551 = vand.u32 2147483647, %v550
  %v553 = vcvt.s32.f32 %v546
  %v554 = vmul.f32 %v553, %v551
  %v555 = vxor.u32 %v554, 2147483648
  %v556 = vsel %vm435, %v555, %v554
  %v557 = vsub.s32 4, %v533
  %v558 = vsel %vm435, %v557, %v533
  %v559 = vsel %vm434, %v264, %v556
  %v560 = vsel %vm434, 0, %v558
  %v561 = vmul.f32 %v559, %v559
  %v562 = vmul.f32 %v561, -0.001358992
  %v563 = vadd.f32 %v562, 0.041655596
  %v564 = vmul.f32 %v561, %v563
  %v565 = vadd.f32 %v564, -0.4999988
  %v566 = vmul.f32 %v561, %v565
  %v567 = vadd.f32 1.0, %v566
  %v568 = vmul.f32 %v559, %v559
  %v569 = vmul.f32 %v568, -0.00019511016
  %v570 = vadd.f32 %v569, 0.008332121
  %v571 = vmul.f32 %v568, %v570
  %v572 = vadd.f32 %v571, -0.16666654
  %v573 = vmul.f32 %v568, %v572
  %v574 = vadd.f32 %v573, 1.0
  %v575 = vmul.f32 %v574, %v559
  %vm576 = vweird.f32 %v264
  %v577 = vand.u32 %v560, 3
  %vm578 = vcmp.lt.s32.totalorder %v577, 2
  %vm579 = vcmp.eq.s32.totalorder %v577, 0
  %v580 = vxor.u32 %v575, 2147483648
  %v581 = vsel %vm579, %v567, %v580
  %vm582 = vcmp.eq.s32.totalorder %v577, 2
  %v583 = vxor.u32 %v567, 2147483648
  %v584 = vsel %vm582, %v583, %v575
  %v585 = vsel %vm578, %v581, %v584
  %v586 = vsel %vm576, nan, %v585
  %v587 = vand.u32 2147483647, %v265
  %vm588 = vcmp.le.f32.partialorder %v587, 0.7853982
  %vm589 = vcmp.lt.s32.totalorder %v265, 0
  %v590 = vand.u32 %v265, 2139095040
  %v591 = vshrl.u32 %v590, 23
  %v592 = vsub.s32 %v591, 127
  %v593 = vand.u32 2147483647, %v265
  %v594 = vand.u32 %v593, 8388607
  %v595 = vor.u32 %v594, 8388608
  %v596 = vsub.s32 0, %v595
  %v597 = vadd.s32 %v592, 1
  %vm598 = vcmp.gt.s32.totalorder %v597, 0
  %v599 = vsel %vm598, %v597, 0
  %v600 = vshrl.u32 %v599, 5
  %v601 = vand.u32 %v599, 31
  %v602 = vsub.s32 32, %v601
  %v603 = vshrl.u32 683565275, %v602
  %v604 = vshll.u32 683565275, %v601
  %v605 = vshrl.u32 2475754826, %v602
  %v606 = vor.u32 %v604, %v605
  %v607 = vshll.u32 2475754826, %v601
  %v608 = vshrl.u32 2131351028, %v602
  %v609 = vor.u32 %v607, %v608
  %v610 = vshll.u32 2131351028, %v601
  %v611 = vshrl.u32 2102212464, %v602
  %v612 = vor.u32 %v610, %v611
  %v613 = vshll.u32 2102212464, %v601
  %v614 = vshrl.u32 920167782, %v602
  %v615 = vor.u32 %v613, %v614
  %v616 = vshll.u32 920167782, %v601
  %v617 = vshrl.u32 1326507024, %v602
  %v618 = vor.u32 %v616, %v617
  %vm619 = vcmp.lt.s32.totalorder %v600, 1
  %vm620 = vcmp.lt.s32.totalorder %v600, 2
  %vm621 = vcmp.lt.s32.totalorder %v600, 3
  %vm622 = vcmp.lt.s32.totalorder %v600, 4
  %v623 = vsel %vm619, %v603, %v606
  %v624 = vsel %vm622, %v612, 2102212464
  %v625 = vsel %vm621, %v609, %v624
  %v626 = vsel %vm620, %v623, %v625
  %v627 = vsel %vm619, %v606, %v609
  %v628 = vsel %vm622, %v615, 920167782
  %v629 = vsel %vm621, %v612, %v628
  %v630 = vsel %vm620, %v627, %v629
  %v631 = vsel %vm619, %v609, %v612
  %v632 = vsel %vm622, %v618, 1326507024
  %v633 = vsel %vm621, %v615, %v632
  %v634 = vsel %vm620, %v631, %v633
  %v635 = vshll.u32 %v595, 8
  %v636 = vand.u32 %v635, 65535
  %v637 = vshrl.u32 %v635, 16
  %v638 = vand.u32 %v634, 65535
  %v639 = vshrl.u32 %v634, 16
  %v640 = vmul.u32 %v636, %v638
  %v641 = vmul.u32 %v636, %v639
  %v642 = vmul.u32 %v637, %v638
  %v643 = vmul.u32 %v637, %v639
  %v644 = vshll.u32 %v641, 16
  %v645 = vshrl.u32 %v641, 16
  %v646 = vshll.u32 %v642, 16
  %v647 = vshrl.u32 %v642, 16
  %vm648 = vc.u32 %v640, %v644
  %v649 = vsel %vm648, 1, 0
  %v650 = vadd.s32 %v640, %v644
  %v651 = vadd.s32 %v643, %v649
  %vm652 = vc.u32 %v650, %v646
  %v653 = vsel %vm652, 1, 0
  %v654 = vadd.s32 %v650, %v646
  %v655 = vadd.s32 %v651, %v653
  %v656 = vadd.s32 %v655, %v645
  %v657 = vadd.s32 %v656, %v647
  %v658 = vand.u32 %v635, 65535
  %v659 = vshrl.u32 %v635, 16
  %v660 = vand.u32 %v630, 65535
  %v661 = vshrl.u32 %v630, 16
  %v662 = vmul.u32 %v658, %v660
  %v663 = vmul.u32 %v658, %v661
  %v664 = vmul.u32 %v659, %v660
  %v665 = vmul.u32 %v659, %v661
  %v666 = vshll.u32 %v663, 16
  %v667 = vshrl.u32 %v663, 16
  %v668 = vshll.u32 %v664, 16
  %v669 = vshrl.u32 %v664, 16
  %vm670 = vc.u32 %v662, %v666
  %v671 = vsel %vm670, 1, 0
  %v672 = vadd.s32 %v662, %v666
  %v673 = vadd.s32 %v665, %v671
  %vm674 = vc.u32 %v672, %v668
  %v675 = vsel %vm674, 1, 0
  %v676 = vadd.s32 %v672, %v668
  %v677 = vadd.s32 %v673, %v675
  %v678 = vadd.s32 %v677, %v667
  %v679 = vadd.s32 %v678, %v669
  %v680 = vmul.u32 %v635, %v626
  %v681 = vadd.s32 %v657, %v676
  %vm682 = vc.u32 %v657, %v676
  %v683 = vadd.s32 %v679, 1
  %v684 = vsel %vm682, %v683, %v679
  %v685 = vadd.s32 %v680, %v684
  %v686 = vadd.s32 %v685, 536870912
  %v687 = vshrl.u32 %v686, 30
  %v688 = vshll.u32 %v687, 30
  %v689 = vsub.s32 %v685, %v688
  %vm690 = vcmp.lt.s32.totalorder %v689, 0
  %v691 = vsub.s32 0, %v689
  %v692 = vsel %vm690, %v691, %v689
  %v693 = vclz %v692
  %v694 = vsub.s32 %v693, 2
  %vm695 = vcmp.gt.s32.totalorder 0, %v694
  %v696 = vsel %vm695, 0, %v694
  %v697 = vsub.s32 32, %v696
  %v698 = vshll.u32 %v689, %v696
  %v699 = vshrl.u32 %v681, %v697
  %v700 = vor.u32 %v698, %v699
  %v701 = vsub.s32 4294967266, %v696
  %v702 = vadd.s32 %v701, 127
  %v703 = vshll.u32 %v702, 23
  %v704 = vor.u32 4788187, %v703
  %v705 = vand.u32 2147483647, %v704
  %v707 = vcvt.s32.f32 %v700
  %v708 = vmul.f32 %v707, %v705
  %v709 = vxor.u32 %v708, 2147483648
  %v710 = vsel %vm589, %v709, %v708
  %v711 = vsub.s32 4, %v687
  %v712 = vsel %vm589, %v711, %v687
  %v713 = vsel %vm588, %v265, %v710
  %v714 = vsel %vm588, 0, %v712
  %v715 = vmul.f32 %v713, %v713
  %v716 = vmul.f32 %v715, -0.001358992
  %v717 = vadd.f32 %v716, 0.041655596
  %v718 = vmul.f32 %v715, %v717
  %v719 = vadd.f32 %v718, -0.4999988
  %v720 = vmul.f32 %v715, %v719
  %v721 = vadd.f32 1.0, %v720
  %v722 = vmul.f32 %v713, %v713
  %v723 = vmul.f32 %v722, -0.00019511016
  %v724 = vadd.f32 %v723, 0.008332121
  %v725 = vmul.f32 %v722, %v724
  %v726 = vadd.f32 %v725, -0.16666654
  %v727 = vmul.f32 %v722, %v726
  %v728 = vadd.f32 %v727, 1.0
  %v729 = vmul.f32 %v728, %v713
  %vm730 = vweird.f32 %v265
  %v731 = vand.u32 %v714, 3
  %vm732 = vcmp.lt.s32.totalorder %v731, 2
  %vm733 = vcmp.eq.s32.totalorder %v731, 0
  %v734 = vxor.u32 %v729, 2147483648
  %v735 = vsel %vm733, %v721, %v734
  %vm736 = vcmp.eq.s32.totalorder %v731, 2
  %v737 = vxor.u32 %v721, 2147483648
  %v738 = vsel %vm736, %v737, %v729
  %v739 = vsel %vm732, %v735, %v738
  %v740 = vsel %vm730, nan, %v739
  %v741 = vand.u32 2147483647, %v266
  %vm742 = vcmp.le.f32.partialorder %v741, 0.7853982
  %vm743 = vcmp.lt.s32.totalorder %v266, 0
  %v744 = vand.u32 %v266, 2139095040
  %v745 = vshrl.u32 %v744, 23
  %v746 = vsub.s32 %v745, 127
  %v747 = vand.u32 2147483647, %v266
  %v748 = vand.u32 %v747, 8388607
  %v749 = vor.u32 %v748, 8388608
  %v750 = vsub.s32 0, %v749
  %v751 = vadd.s32 %v746, 1
  %vm752 = vcmp.gt.s32.totalorder %v751, 0
  %v753 = vsel %vm752, %v751, 0
  %v754 = vshrl.u32 %v753, 5
  %v755 = vand.u32 %v753, 31
  %v756 = vsub.s32 32, %v755
  %v757 = vshrl.u32 683565275, %v756
  %v758 = vshll.u32 683565275, %v755
  %v759 = vshrl.u32 2475754826, %v756
  %v760 = vor.u32 %v758, %v759
  %v761 = vshll.u32 2475754826, %v755
  %v762 = vshrl.u32 2131351028, %v756
  %v763 = vor.u32 %v761, %v762
  %v764 = vshll.u32 2131351028, %v755
  %v765 = vshrl.u32 2102212464, %v756
  %v766 = vor.u32 %v764, %v765
  %v767 = vshll.u32 2102212464, %v755
  %v768 = vshrl.u32 920167782, %v756
  %v769 = vor.u32 %v767, %v768
  %v770 = vshll.u32 920167782, %v755
  %v771 = vshrl.u32 1326507024, %v756
  %v772 = vor.u32 %v770, %v771
  %vm773 = vcmp.lt.s32.totalorder %v754, 1
  %vm774 = vcmp.lt.s32.totalorder %v754, 2
  %vm775 = vcmp.lt.s32.totalorder %v754, 3
  %vm776 = vcmp.lt.s32.totalorder %v754, 4
  %v777 = vsel %vm773, %v757, %v760
  %v778 = vsel %vm776, %v766, 2102212464
  %v779 = vsel %vm775, %v763, %v778
  %v780 = vsel %vm774, %v777, %v779
  %v781 = vsel %vm773, %v760, %v763
  %v782 = vsel %vm776, %v769, 920167782
  %v783 = vsel %vm775, %v766, %v782
  %v784 = vsel %vm774, %v781, %v783
  %v785 = vsel %vm773, %v763, %v766
  %v786 = vsel %vm776, %v772, 1326507024
  %v787 = vsel %vm775, %v769, %v786
  %v788 = vsel %vm774, %v785, %v787
  %v789 = vshll.u32 %v749, 8
  %v790 = vand.u32 %v789, 65535
  %v791 = vshrl.u32 %v789, 16
  %v792 = vand.u32 %v788, 65535
  %v793 = vshrl.u32 %v788, 16
  %v794 = vmul.u32 %v790, %v792
  %v795 = vmul.u32 %v790, %v793
  %v796 = vmul.u32 %v791, %v792
  %v797 = vmul.u32 %v791, %v793
  %v798 = vshll.u32 %v795, 16
  %v799 = vshrl.u32 %v795, 16
  %v800 = vshll.u32 %v796, 16
  %v801 = vshrl.u32 %v796, 16
  %vm802 = vc.u32 %v794, %v798
  %v803 = vsel %vm802, 1, 0
  %v804 = vadd.s32 %v794, %v798
  %v805 = vadd.s32 %v797, %v803
  %vm806 = vc.u32 %v804, %v800
  %v807 = vsel %vm806, 1, 0
  %v808 = vadd.s32 %v804, %v800
  %v809 = vadd.s32 %v805, %v807
  %v810 = vadd.s32 %v809, %v799
  %v811 = vadd.s32 %v810, %v801
  %v812 = vand.u32 %v789, 65535
  %v813 = vshrl.u32 %v789, 16
  %v814 = vand.u32 %v784, 65535
  %v815 = vshrl.u32 %v784, 16
  %v816 = vmul.u32 %v812, %v814
  %v817 = vmul.u32 %v812, %v815
  %v818 = vmul.u32 %v813, %v814
  %v819 = vmul.u32 %v813, %v815
  %v820 = vshll.u32 %v817, 16
  %v821 = vshrl.u32 %v817, 16
  %v822 = vshll.u32 %v818, 16
  %v823 = vshrl.u32 %v818, 16
  %vm824 = vc.u32 %v816, %v820
  %v825 = vsel %vm824, 1, 0
  %v826 = vadd.s32 %v816, %v820
  %v827 = vadd.s32 %v819, %v825
  %vm828 = vc.u32 %v826, %v822
  %v829 = vsel %vm828, 1, 0
  %v830 = vadd.s32 %v826, %v822
  %v831 = vadd.s32 %v827, %v829
  %v832 = vadd.s32 %v831, %v821
  %v833 = vadd.s32 %v832, %v823
  %v834 = vmul.u32 %v789, %v780
  %v835 = vadd.s32 %v811, %v830
  %vm836 = vc.u32 %v811, %v830
  %v837 = vadd.s32 %v833, 1
  %v838 = vsel %vm836, %v837, %v833
  %v839 = vadd.s32 %v834, %v838
  %v840 = vadd.s32 %v839, 536870912
  %v841 = vshrl.u32 %v840, 30
  %v842 = vshll.u32 %v841, 30
  %v843 = vsub.s32 %v839, %v842
  %vm844 = vcmp.lt.s32.totalorder %v843, 0
  %v845 = vsub.s32 0, %v843
  %v846 = vsel %vm844, %v845, %v843
  %v847 = vclz %v846
  %v848 = vsub.s32 %v847, 2
  %vm849 = vcmp.gt.s32.totalorder 0, %v848
  %v850 = vsel %vm849, 0, %v848
  %v851 = vsub.s32 32, %v850
  %v852 = vshll.u32 %v843, %v850
  %v853 = vshrl.u32 %v835, %v851
  %v854 = vor.u32 %v852, %v853
  %v855 = vsub.s32 4294967266, %v850
  %v856 = vadd.s32 %v855, 127
  %v857 = vshll.u32 %v856, 23
  %v858 = vor.u32 4788187, %v857
  %v859 = vand.u32 2147483647, %v858
  %v861 = vcvt.s32.f32 %v854
  %v862 = vmul.f32 %v861, %v859
  %v863 = vxor.u32 %v862, 2147483648
  %v864 = vsel %vm743, %v863, %v862
  %v865 = vsub.s32 4, %v841
  %v866 = vsel %vm743, %v865, %v841
  %v867 = vsel %vm742, %v266, %v864
  %v868 = vsel %vm742, 0, %v866
  %v869 = vmul.f32 %v867, %v867
  %v870 = vmul.f32 %v869, -0.001358992
  %v871 = vadd.f32 %v870, 0.041655596
  %v872 = vmul.f32 %v869, %v871
  %v873 = vadd.f32 %v872, -0.4999988
  %v874 = vmul.f32 %v869, %v873
  %v875 = vadd.f32 1.0, %v874
  %v876 = vmul.f32 %v867, %v867
  %v877 = vmul.f32 %v876, -0.00019511016
  %v878 = vadd.f32 %v877, 0.008332121
  %v879 = vmul.f32 %v876, %v878
  %v880 = vadd.f32 %v879, -0.16666654
  %v881 = vmul.f32 %v876, %v880
  %v882 = vadd.f32 %v881, 1.0
  %v883 = vmul.f32 %v882, %v867
  %vm884 = vweird.f32 %v266
  %v885 = vand.u32 %v868, 3
  %vm886 = vcmp.lt.s32.totalorder %v885, 2
  %vm887 = vcmp.eq.s32.totalorder %v885, 0
  %v888 = vxor.u32 %v883, 2147483648
  %v889 = vsel %vm887, %v875, %v888
  %vm890 = vcmp.eq.s32.totalorder %v885, 2
  %v891 = vxor.u32 %v875, 2147483648
  %v892 = vsel %vm890, %v891, %v883
  %v893 = vsel %vm886, %v889, %v892
  %v894 = vsel %vm884, nan, %v893
  %v895 = vand.u32 2147483647, %v267
  %vm896 = vcmp.le.f32.partialorder %v895, 0.7853982
  %vm897 = vcmp.lt.s32.totalorder %v267, 0
  %v898 = vand.u32 %v267, 2139095040
  %v899 = vshrl.u32 %v898, 23
  %v900 = vsub.s32 %v899, 127
  %v901 = vand.u32 2147483647, %v267
  %v902 = vand.u32 %v901, 8388607
  %v903 = vor.u32 %v902, 8388608
  %v904 = vsub.s32 0, %v903
  %v905 = vadd.s32 %v900, 1
  %vm906 = vcmp.gt.s32.totalorder %v905, 0
  %v907 = vsel %vm906, %v905, 0
  %v908 = vshrl.u32 %v907, 5
  %v909 = vand.u32 %v907, 31
  %v910 = vsub.s32 32, %v909
  %v911 = vshrl.u32 683565275, %v910
  %v912 = vshll.u32 683565275, %v909
  %v913 = vshrl.u32 2475754826, %v910
  %v914 = vor.u32 %v912, %v913
  %v915 = vshll.u32 2475754826, %v909
  %v916 = vshrl.u32 2131351028, %v910
  %v917 = vor.u32 %v915, %v916
  %v918 = vshll.u32 2131351028, %v909
  %v919 = vshrl.u32 2102212464, %v910
  %v920 = vor.u32 %v918, %v919
  %v921 = vshll.u32 2102212464, %v909
  %v922 = vshrl.u32 920167782, %v910
  %v923 = vor.u32 %v921, %v922
  %v924 = vshll.u32 920167782, %v909
  %v925 = vshrl.u32 1326507024, %v910
  %v926 = vor.u32 %v924, %v925
  %vm927 = vcmp.lt.s32.totalorder %v908, 1
  %vm928 = vcmp.lt.s32.totalorder %v908, 2
  %vm929 = vcmp.lt.s32.totalorder %v908, 3
  %vm930 = vcmp.lt.s32.totalorder %v908, 4
  %v931 = vsel %vm927, %v911, %v914
  %v932 = vsel %vm930, %v920, 2102212464
  %v933 = vsel %vm929, %v917, %v932
  %v934 = vsel %vm928, %v931, %v933
  %v935 = vsel %vm927, %v914, %v917
  %v936 = vsel %vm930, %v923, 920167782
  %v937 = vsel %vm929, %v920, %v936
  %v938 = vsel %vm928, %v935, %v937
  %v939 = vsel %vm927, %v917, %v920
  %v940 = vsel %vm930, %v926, 1326507024
  %v941 = vsel %vm929, %v923, %v940
  %v942 = vsel %vm928, %v939, %v941
  %v943 = vshll.u32 %v903, 8
  %v944 = vand.u32 %v943, 65535
  %v945 = vshrl.u32 %v943, 16
  %v946 = vand.u32 %v942, 65535
  %v947 = vshrl.u32 %v942, 16
  %v948 = vmul.u32 %v944, %v946
  %v949 = vmul.u32 %v944, %v947
  %v950 = vmul.u32 %v945, %v946
  %v951 = vmul.u32 %v945, %v947
  %v952 = vshll.u32 %v949, 16
  %v953 = vshrl.u32 %v949, 16
  %v954 = vshll.u32 %v950, 16
  %v955 = vshrl.u32 %v950, 16
  %vm956 = vc.u32 %v948, %v952
  %v957 = vsel %vm956, 1, 0
  %v958 = vadd.s32 %v948, %v952
  %v959 = vadd.s32 %v951, %v957
  %vm960 = vc.u32 %v958, %v954
  %v961 = vsel %vm960, 1, 0
  %v962 = vadd.s32 %v958, %v954
  %v963 = vadd.s32 %v959, %v961
  %v964 = vadd.s32 %v963, %v953
  %v965 = vadd.s32 %v964, %v955
  %v966 = vand.u32 %v943, 65535
  %v967 = vshrl.u32 %v943, 16
  %v968 = vand.u32 %v938, 65535
  %v969 = vshrl.u32 %v938, 16
  %v970 = vmul.u32 %v966, %v968
  %v971 = vmul.u32 %v966, %v969
  %v972 = vmul.u32 %v967, %v968
  %v973 = vmul.u32 %v967, %v969
  %v974 = vshll.u32 %v971, 16
  %v975 = vshrl.u32 %v971, 16
  %v976 = vshll.u32 %v972, 16
  %v977 = vshrl.u32 %v972, 16
  %vm978 = vc.u32 %v970, %v974
  %v979 = vsel %vm978, 1, 0
  %v980 = vadd.s32 %v970, %v974
  %v981 = vadd.s32 %v973, %v979
  %vm982 = vc.u32 %v980, %v976
  %v983 = vsel %vm982, 1, 0
  %v984 = vadd.s32 %v980, %v976
  %v985 = vadd.s32 %v981, %v983
  %v986 = vadd.s32 %v985, %v975
  %v987 = vadd.s32 %v986, %v977
  %v988 = vmul.u32 %v943, %v934
  %v989 = vadd.s32 %v965, %v984
  %vm990 = vc.u32 %v965, %v984
  %v991 = vadd.s32 %v987, 1
  %v992 = vsel %vm990, %v991, %v987
  %v993 = vadd.s32 %v988, %v992
  %v994 = vadd.s32 %v993, 536870912
  %v995 = vshrl.u32 %v994, 30
  %v996 = vshll.u32 %v995, 30
  %v997 = vsub.s32 %v993, %v996
  %vm998 = vcmp.lt.s32.totalorder %v997, 0
  %v999 = vsub.s32 0, %v997
  %v1000 = vsel %vm998, %v999, %v997
  %v1001 = vclz %v1000
  %v1002 = vsub.s32 %v1001, 2
  %vm1003 = vcmp.gt.s32.totalorder 0, %v1002
  %v1004 = vsel %vm1003, 0, %v1002
  %v1005 = vsub.s32 32, %v1004
  %v1006 = vshll.u32 %v997, %v1004
  %v1007 = vshrl.u32 %v989, %v1005
  %v1008 = vor.u32 %v1006, %v1007
  %v1009 = vsub.s32 4294967266, %v1004
  %v1010 = vadd.s32 %v1009, 127
  %v1011 = vshll.u32 %v1010, 23
  %v1012 = vor.u32 4788187, %v1011
  %v1013 = vand.u32 2147483647, %v1012
  %v1015 = vcvt.s32.f32 %v1008
  %v1016 = vmul.f32 %v1015, %v1013
  %v1017 = vxor.u32 %v1016, 2147483648
  %v1018 = vsel %vm897, %v1017, %v1016
  %v1019 = vsub.s32 4, %v995
  %v1020 = vsel %vm897, %v1019, %v995
  %v1021 = vsel %vm896, %v267, %v1018
  %v1022 = vsel %vm896, 0, %v1020
  %v1023 = vmul.f32 %v1021, %v1021
  %v1024 = vmul.f32 %v1023, -0.001358992
  %v1025 = vadd.f32 %v1024, 0.041655596
  %v1026 = vmul.f32 %v1023, %v1025
  %v1027 = vadd.f32 %v1026, -0.4999988
  %v1028 = vmul.f32 %v1023, %v1027
  %v1029 = vadd.f32 1.0, %v1028
  %v1030 = vmul.f32 %v1021, %v1021
  %v1031 = vmul.f32 %v1030, -0.00019511016
  %v1032 = vadd.f32 %v1031, 0.008332121
  %v1033 = vmul.f32 %v1030, %v1032
  %v1034 = vadd.f32 %v1033, -0.16666654
  %v1035 = vmul.f32 %v1030, %v1034
  %v1036 = vadd.f32 %v1035, 1.0
  %v1037 = vmul.f32 %v1036, %v1021
  %vm1038 = vweird.f32 %v267
  %v1039 = vand.u32 %v1022, 3
  %vm1040 = vcmp.lt.s32.totalorder %v1039, 2
  %vm1041 = vcmp.eq.s32.totalorder %v1039, 0
  %v1042 = vxor.u32 %v1037, 2147483648
  %v1043 = vsel %vm1041, %v1029, %v1042
  %vm1044 = vcmp.eq.s32.totalorder %v1039, 2
  %v1045 = vxor.u32 %v1029, 2147483648
  %v1046 = vsel %vm1044, %v1045, %v1037
  %v1047 = vsel %vm1040, %v1043, %v1046
  %v1048 = vsel %vm1038, nan, %v1047
  %v1049 = vand.u32 2147483647, %v268
  %vm1050 = vcmp.le.f32.partialorder %v1049, 0.7853982
  %vm1051 = vcmp.lt.s32.totalorder %v268, 0
  %v1052 = vand.u32 %v268, 2139095040
  %v1053 = vshrl.u32 %v1052, 23
  %v1054 = vsub.s32 %v1053, 127
  %v1055 = vand.u32 2147483647, %v268
  %v1056 = vand.u32 %v1055, 8388607
  %v1057 = vor.u32 %v1056, 8388608
  %v1058 = vsub.s32 0, %v1057
  %v1059 = vadd.s32 %v1054, 1
  %vm1060 = vcmp.gt.s32.totalorder %v1059, 0
  %v1061 = vsel %vm1060, %v1059, 0
  %v1062 = vshrl.u32 %v1061, 5
  %v1063 = vand.u32 %v1061, 31
  %v1064 = vsub.s32 32, %v1063
  %v1065 = vshrl.u32 683565275, %v1064
  %v1066 = vshll.u32 683565275, %v1063
  %v1067 = vshrl.u32 2475754826, %v1064
  %v1068 = vor.u32 %v1066, %v1067
  %v1069 = vshll.u32 2475754826, %v1063
  %v1070 = vshrl.u32 2131351028, %v1064
  %v1071 = vor.u32 %v1069, %v1070
  %v1072 = vshll.u32 2131351028, %v1063
  %v1073 = vshrl.u32 2102212464, %v1064
  %v1074 = vor.u32 %v1072, %v1073
  %v1075 = vshll.u32 2102212464, %v1063
  %v1076 = vshrl.u32 920167782, %v1064
  %v1077 = vor.u32 %v1075, %v1076
  %v1078 = vshll.u32 920167782, %v1063
  %v1079 = vshrl.u32 1326507024, %v1064
  %v1080 = vor.u32 %v1078, %v1079
  %vm1081 = vcmp.lt.s32.totalorder %v1062, 1
  %vm1082 = vcmp.lt.s32.totalorder %v1062, 2
  %vm1083 = vcmp.lt.s32.totalorder %v1062, 3
  %vm1084 = vcmp.lt.s32.totalorder %v1062, 4
  %v1085 = vsel %vm1081, %v1065, %v1068
  %v1086 = vsel %vm1084, %v1074, 2102212464
  %v1087 = vsel %vm1083, %v1071, %v1086
  %v1088 = vsel %vm1082, %v1085, %v1087
  %v1089 = vsel %vm1081, %v1068, %v1071
  %v1090 = vsel %vm1084, %v1077, 920167782
  %v1091 = vsel %vm1083, %v1074, %v1090
  %v1092 = vsel %vm1082, %v1089, %v1091
  %v1093 = vsel %vm1081, %v1071, %v1074
  %v1094 = vsel %vm1084, %v1080, 1326507024
  %v1095 = vsel %vm1083, %v1077, %v1094
  %v1096 = vsel %vm1082, %v1093, %v1095
  %v1097 = vshll.u32 %v1057, 8
  %v1098 = vand.u32 %v1097, 65535
  %v1099 = vshrl.u32 %v1097, 16
  %v1100 = vand.u32 %v1096, 65535
  %v1101 = vshrl.u32 %v1096, 16
  %v1102 = vmul.u32 %v1098, %v1100
  %v1103 = vmul.u32 %v1098, %v1101
  %v1104 = vmul.u32 %v1099, %v1100
  %v1105 = vmul.u32 %v1099, %v1101
  %v1106 = vshll.u32 %v1103, 16
  %v1107 = vshrl.u32 %v1103, 16
  %v1108 = vshll.u32 %v1104, 16
  %v1109 = vshrl.u32 %v1104, 16
  %vm1110 = vc.u32 %v1102, %v1106
  %v1111 = vsel %vm1110, 1, 0
  %v1112 = vadd.s32 %v1102, %v1106
  %v1113 = vadd.s32 %v1105, %v1111
  %vm1114 = vc.u32 %v1112, %v1108
  %v1115 = vsel %vm1114, 1, 0
  %v1116 = vadd.s32 %v1112, %v1108
  %v1117 = vadd.s32 %v1113, %v1115
  %v1118 = vadd.s32 %v1117, %v1107
  %v1119 = vadd.s32 %v1118, %v1109
  %v1120 = vand.u32 %v1097, 65535
  %v1121 = vshrl.u32 %v1097, 16
  %v1122 = vand.u32 %v1092, 65535
  %v1123 = vshrl.u32 %v1092, 16
  %v1124 = vmul.u32 %v1120, %v1122
  %v1125 = vmul.u32 %v1120, %v1123
  %v1126 = vmul.u32 %v1121, %v1122
  %v1127 = vmul.u32 %v1121, %v1123
  %v1128 = vshll.u32 %v1125, 16
  %v1129 = vshrl.u32 %v1125, 16
  %v1130 = vshll.u32 %v1126, 16
  %v1131 = vshrl.u32 %v1126, 16
  %vm1132 = vc.u32 %v1124, %v1128
  %v1133 = vsel %vm1132, 1, 0
  %v1134 = vadd.s32 %v1124, %v1128
  %v1135 = vadd.s32 %v1127, %v1133
  %vm1136 = vc.u32 %v1134, %v1130
  %v1137 = vsel %vm1136, 1, 0
  %v1138 = vadd.s32 %v1134, %v1130
  %v1139 = vadd.s32 %v1135, %v1137
  %v1140 = vadd.s32 %v1139, %v1129
  %v1141 = vadd.s32 %v1140, %v1131
  %v1142 = vmul.u32 %v1097, %v1088
  %v1143 = vadd.s32 %v1119, %v1138
  %vm1144 = vc.u32 %v1119, %v1138
  %v1145 = vadd.s32 %v1141, 1
  %v1146 = vsel %vm1144, %v1145, %v1141
  %v1147 = vadd.s32 %v1142, %v1146
  %v1148 = vadd.s32 %v1147, 536870912
  %v1149 = vshrl.u32 %v1148, 30
  %v1150 = vshll.u32 %v1149, 30
  %v1151 = vsub.s32 %v1147, %v1150
  %vm1152 = vcmp.lt.s32.totalorder %v1151, 0
  %v1153 = vsub.s32 0, %v1151
  %v1154 = vsel %vm1152, %v1153, %v1151
  %v1155 = vclz %v1154
  %v1156 = vsub.s32 %v1155, 2
  %vm1157 = vcmp.gt.s32.totalorder 0, %v1156
  %v1158 = vsel %vm1157, 0, %v1156
  %v1159 = vsub.s32 32, %v1158
  %v1160 = vshll.u32 %v1151, %v1158
  %v1161 = vshrl.u32 %v1143, %v1159
  %v1162 = vor.u32 %v1160, %v1161
  %v1163 = vsub.s32 4294967266, %v1158
  %v1164 = vadd.s32 %v1163, 127
  %v1165 = vshll.u32 %v1164, 23
  %v1166 = vor.u32 4788187, %v1165
  %v1167 = vand.u32 2147483647, %v1166
  %v1169 = vcvt.s32.f32 %v1162
  %v1170 = vmul.f32 %v1169, %v1167
  %v1171 = vxor.u32 %v1170, 2147483648
  %v1172 = vsel %vm1051, %v1171, %v1170
  %v1173 = vsub.s32 4, %v1149
  %v1174 = vsel %vm1051, %v1173, %v1149
  %v1175 = vsel %vm1050, %v268, %v1172
  %v1176 = vsel %vm1050, 0, %v1174
  %v1177 = vmul.f32 %v1175, %v1175
  %v1178 = vmul.f32 %v1177, -0.001358992
  %v1179 = vadd.f32 %v1178, 0.041655596
  %v1180 = vmul.f32 %v1177, %v1179
  %v1181 = vadd.f32 %v1180, -0.4999988
  %v1182 = vmul.f32 %v1177, %v1181
  %v1183 = vadd.f32 1.0, %v1182
  %v1184 = vmul.f32 %v1175, %v1175
  %v1185 = vmul.f32 %v1184, -0.00019511016
  %v1186 = vadd.f32 %v1185, 0.008332121
  %v1187 = vmul.f32 %v1184, %v1186
  %v1188 = vadd.f32 %v1187, -0.16666654
  %v1189 = vmul.f32 %v1184, %v1188
  %v1190 = vadd.f32 %v1189, 1.0
  %v1191 = vmul.f32 %v1190, %v1175
  %vm1192 = vweird.f32 %v268
  %v1193 = vand.u32 %v1176, 3
  %vm1194 = vcmp.lt.s32.totalorder %v1193, 2
  %vm1195 = vcmp.eq.s32.totalorder %v1193, 0
  %v1196 = vxor.u32 %v1191, 2147483648
  %v1197 = vsel %vm1195, %v1183, %v1196
  %vm1198 = vcmp.eq.s32.totalorder %v1193, 2
  %v1199 = vxor.u32 %v1183, 2147483648
  %v1200 = vsel %vm1198, %v1199, %v1191
  %v1201 = vsel %vm1194, %v1197, %v1200
  %v1202 = vsel %vm1192, nan, %v1201
  %v1203 = vand.u32 2147483647, %v269
  %vm1204 = vcmp.le.f32.partialorder %v1203, 0.7853982
  %vm1205 = vcmp.lt.s32.totalorder %v269, 0
  %v1206 = vand.u32 %v269, 2139095040
  %v1207 = vshrl.u32 %v1206, 23
  %v1208 = vsub.s32 %v1207, 127
  %v1209 = vand.u32 2147483647, %v269
  %v1210 = vand.u32 %v1209, 8388607
  %v1211 = vor.u32 %v1210, 8388608
  %v1212 = vsub.s32 0, %v1211
  %v1213 = vadd.s32 %v1208, 1
  %vm1214 = vcmp.gt.s32.totalorder %v1213, 0
  %v1215 = vsel %vm1214, %v1213, 0
  %v1216 = vshrl.u32 %v1215, 5
  %v1217 = vand.u32 %v1215, 31
  %v1218 = vsub.s32 32, %v1217
  %v1219 = vshrl.u32 683565275, %v1218
  %v1220 = vshll.u32 683565275, %v1217
  %v1221 = vshrl.u32 2475754826, %v1218
  %v1222 = vor.u32 %v1220, %v1221
  %v1223 = vshll.u32 2475754826, %v1217
  %v1224 = vshrl.u32 2131351028, %v1218
  %v1225 = vor.u32 %v1223, %v1224
  %v1226 = vshll.u32 2131351028, %v1217
  %v1227 = vshrl.u32 2102212464, %v1218
  %v1228 = vor.u32 %v1226, %v1227
  %v1229 = vshll.u32 2102212464, %v1217
  %v1230 = vshrl.u32 920167782, %v1218
  %v1231 = vor.u32 %v1229, %v1230
  %v1232 = vshll.u32 920167782, %v1217
  %v1233 = vshrl.u32 1326507024, %v1218
  %v1234 = vor.u32 %v1232, %v1233
  %vm1235 = vcmp.lt.s32.totalorder %v1216, 1
  %vm1236 = vcmp.lt.s32.totalorder %v1216, 2
  %vm1237 = vcmp.lt.s32.totalorder %v1216, 3
  %vm1238 = vcmp.lt.s32.totalorder %v1216, 4
  %v1239 = vsel %vm1235, %v1219, %v1222
  %v1240 = vsel %vm1238, %v1228, 2102212464
  %v1241 = vsel %vm1237, %v1225, %v1240
  %v1242 = vsel %vm1236, %v1239, %v1241
  %v1243 = vsel %vm1235, %v1222, %v1225
  %v1244 = vsel %vm1238, %v1231, 920167782
  %v1245 = vsel %vm1237, %v1228, %v1244
  %v1246 = vsel %vm1236, %v1243, %v1245
  %v1247 = vsel %vm1235, %v1225, %v1228
  %v1248 = vsel %vm1238, %v1234, 1326507024
  %v1249 = vsel %vm1237, %v1231, %v1248
  %v1250 = vsel %vm1236, %v1247, %v1249
  %v1251 = vshll.u32 %v1211, 8
  %v1252 = vand.u32 %v1251, 65535
  %v1253 = vshrl.u32 %v1251, 16
  %v1254 = vand.u32 %v1250, 65535
  %v1255 = vshrl.u32 %v1250, 16
  %v1256 = vmul.u32 %v1252, %v1254
  %v1257 = vmul.u32 %v1252, %v1255
  %v1258 = vmul.u32 %v1253, %v1254
  %v1259 = vmul.u32 %v1253, %v1255
  %v1260 = vshll.u32 %v1257, 16
  %v1261 = vshrl.u32 %v1257, 16
  %v1262 = vshll.u32 %v1258, 16
  %v1263 = vshrl.u32 %v1258, 16
  %vm1264 = vc.u32 %v1256, %v1260
  %v1265 = vsel %vm1264, 1, 0
  %v1266 = vadd.s32 %v1256, %v1260
  %v1267 = vadd.s32 %v1259, %v1265
  %vm1268 = vc.u32 %v1266, %v1262
  %v1269 = vsel %vm1268, 1, 0
  %v1270 = vadd.s32 %v1266, %v1262
  %v1271 = vadd.s32 %v1267, %v1269
  %v1272 = vadd.s32 %v1271, %v1261
  %v1273 = vadd.s32 %v1272, %v1263
  %v1274 = vand.u32 %v1251, 65535
  %v1275 = vshrl.u32 %v1251, 16
  %v1276 = vand.u32 %v1246, 65535
  %v1277 = vshrl.u32 %v1246, 16
  %v1278 = vmul.u32 %v1274, %v1276
  %v1279 = vmul.u32 %v1274, %v1277
  %v1280 = vmul.u32 %v1275, %v1276
  %v1281 = vmul.u32 %v1275, %v1277
  %v1282 = vshll.u32 %v1279, 16
  %v1283 = vshrl.u32 %v1279, 16
  %v1284 = vshll.u32 %v1280, 16
  %v1285 = vshrl.u32 %v1280, 16
  %vm1286 = vc.u32 %v1278, %v1282
  %v1287 = vsel %vm1286, 1, 0
  %v1288 = vadd.s32 %v1278, %v1282
  %v1289 = vadd.s32 %v1281, %v1287
  %vm1290 = vc.u32 %v1288, %v1284
  %v1291 = vsel %vm1290, 1, 0
  %v1292 = vadd.s32 %v1288, %v1284
  %v1293 = vadd.s32 %v1289, %v1291
  %v1294 = vadd.s32 %v1293, %v1283
  %v1295 = vadd.s32 %v1294, %v1285
  %v1296 = vmul.u32 %v1251, %v1242
  %v1297 = vadd.s32 %v1273, %v1292
  %vm1298 = vc.u32 %v1273, %v1292
  %v1299 = vadd.s32 %v1295, 1
  %v1300 = vsel %vm1298, %v1299, %v1295
  %v1301 = vadd.s32 %v1296, %v1300
  %v1302 = vadd.s32 %v1301, 536870912
  %v1303 = vshrl.u32 %v1302, 30
  %v1304 = vshll.u32 %v1303, 30
  %v1305 = vsub.s32 %v1301, %v1304
  %vm1306 = vcmp.lt.s32.totalorder %v1305, 0
  %v1307 = vsub.s32 0, %v1305
  %v1308 = vsel %vm1306, %v1307, %v1305
  %v1309 = vclz %v1308
  %v1310 = vsub.s32 %v1309, 2
  %vm1311 = vcmp.gt.s32.totalorder 0, %v1310
  %v1312 = vsel %vm1311, 0, %v1310
  %v1313 = vsub.s32 32, %v1312
  %v1314 = vshll.u32 %v1305, %v1312
  %v1315 = vshrl.u32 %v1297, %v1313
  %v1316 = vor.u32 %v1314, %v1315
  %v1317 = vsub.s32 4294967266, %v1312
  %v1318 = vadd.s32 %v1317, 127
  %v1319 = vshll.u32 %v1318, 23
  %v1320 = vor.u32 4788187, %v1319
  %v1321 = vand.u32 2147483647, %v1320
  %v1323 = vcvt.s32.f32 %v1316
  %v1324 = vmul.f32 %v1323, %v1321
  %v1325 = vxor.u32 %v1324, 2147483648
  %v1326 = vsel %vm1205, %v1325, %v1324
  %v1327 = vsub.s32 4, %v1303
  %v1328 = vsel %vm1205, %v1327, %v1303
  %v1329 = vsel %vm1204, %v269, %v1326
  %v1330 = vsel %vm1204, 0, %v1328
  %v1331 = vmul.f32 %v1329, %v1329
  %v1332 = vmul.f32 %v1331, -0.001358992
  %v1333 = vadd.f32 %v1332, 0.041655596
  %v1334 = vmul.f32 %v1331, %v1333
  %v1335 = vadd.f32 %v1334, -0.4999988
  %v1336 = vmul.f32 %v1331, %v1335
  %v1337 = vadd.f32 1.0, %v1336
  %v1338 = vmul.f32 %v1329, %v1329
  %v1339 = vmul.f32 %v1338, -0.00019511016
  %v1340 = vadd.f32 %v1339, 0.008332121
  %v1341 = vmul.f32 %v1338, %v1340
  %v1342 = vadd.f32 %v1341, -0.16666654
  %v1343 = vmul.f32 %v1338, %v1342
  %v1344 = vadd.f32 %v1343, 1.0
  %v1345 = vmul.f32 %v1344, %v1329
  %vm1346 = vweird.f32 %v269
  %v1347 = vand.u32 %v1330, 3
  %vm1348 = vcmp.lt.s32.totalorder %v1347, 2
  %vm1349 = vcmp.eq.s32.totalorder %v1347, 0
  %v1350 = vxor.u32 %v1345, 2147483648
  %v1351 = vsel %vm1349, %v1337, %v1350
  %vm1352 = vcmp.eq.s32.totalorder %v1347, 2
  %v1353 = vxor.u32 %v1337, 2147483648
  %v1354 = vsel %vm1352, %v1353, %v1345
  %v1355 = vsel %vm1348, %v1351, %v1354
  %v1356 = vsel %vm1346, nan, %v1355
  %v1357 = vand.u32 2147483647, %v270
  %vm1358 = vcmp.le.f32.partialorder %v1357, 0.7853982
  %vm1359 = vcmp.lt.s32.totalorder %v270, 0
  %v1360 = vand.u32 %v270, 2139095040
  %v1361 = vshrl.u32 %v1360, 23
  %v1362 = vsub.s32 %v1361, 127
  %v1363 = vand.u32 2147483647, %v270
  %v1364 = vand.u32 %v1363, 8388607
  %v1365 = vor.u32 %v1364, 8388608
  %v1366 = vsub.s32 0, %v1365
  %v1367 = vadd.s32 %v1362, 1
  %vm1368 = vcmp.gt.s32.totalorder %v1367, 0
  %v1369 = vsel %vm1368, %v1367, 0
  %v1370 = vshrl.u32 %v1369, 5
  %v1371 = vand.u32 %v1369, 31
  %v1372 = vsub.s32 32, %v1371
  %v1373 = vshrl.u32 683565275, %v1372
  %v1374 = vshll.u32 683565275, %v1371
  %v1375 = vshrl.u32 2475754826, %v1372
  %v1376 = vor.u32 %v1374, %v1375
  %v1377 = vshll.u32 2475754826, %v1371
  %v1378 = vshrl.u32 2131351028, %v1372
  %v1379 = vor.u32 %v1377, %v1378
  %v1380 = vshll.u32 2131351028, %v1371
  %v1381 = vshrl.u32 2102212464, %v1372
  %v1382 = vor.u32 %v1380, %v1381
  %v1383 = vshll.u32 2102212464, %v1371
  %v1384 = vshrl.u32 920167782, %v1372
  %v1385 = vor.u32 %v1383, %v1384
  %v1386 = vshll.u32 920167782, %v1371
  %v1387 = vshrl.u32 1326507024, %v1372
  %v1388 = vor.u32 %v1386, %v1387
  %vm1389 = vcmp.lt.s32.totalorder %v1370, 1
  %vm1390 = vcmp.lt.s32.totalorder %v1370, 2
  %vm1391 = vcmp.lt.s32.totalorder %v1370, 3
  %vm1392 = vcmp.lt.s32.totalorder %v1370, 4
  %v1393 = vsel %vm1389, %v1373, %v1376
  %v1394 = vsel %vm1392, %v1382, 2102212464
  %v1395 = vsel %vm1391, %v1379, %v1394
  %v1396 = vsel %vm1390, %v1393, %v1395
  %v1397 = vsel %vm1389, %v1376, %v1379
  %v1398 = vsel %vm1392, %v1385, 920167782
  %v1399 = vsel %vm1391, %v1382, %v1398
  %v1400 = vsel %vm1390, %v1397, %v1399
  %v1401 = vsel %vm1389, %v1379, %v1382
  %v1402 = vsel %vm1392, %v1388, 1326507024
  %v1403 = vsel %vm1391, %v1385, %v1402
  %v1404 = vsel %vm1390, %v1401, %v1403
  %v1405 = vshll.u32 %v1365, 8
  %v1406 = vand.u32 %v1405, 65535
  %v1407 = vshrl.u32 %v1405, 16
  %v1408 = vand.u32 %v1404, 65535
  %v1409 = vshrl.u32 %v1404, 16
  %v1410 = vmul.u32 %v1406, %v1408
  %v1411 = vmul.u32 %v1406, %v1409
  %v1412 = vmul.u32 %v1407, %v1408
  %v1413 = vmul.u32 %v1407, %v1409
  %v1414 = vshll.u32 %v1411, 16
  %v1415 = vshrl.u32 %v1411, 16
  %v1416 = vshll.u32 %v1412, 16
  %v1417 = vshrl.u32 %v1412, 16
  %vm1418 = vc.u32 %v1410, %v1414
  %v1419 = vsel %vm1418, 1, 0
  %v1420 = vadd.s32 %v1410, %v1414
  %v1421 = vadd.s32 %v1413, %v1419
  %vm1422 = vc.u32 %v1420, %v1416
  %v1423 = vsel %vm1422, 1, 0
  %v1424 = vadd.s32 %v1420, %v1416
  %v1425 = vadd.s32 %v1421, %v1423
  %v1426 = vadd.s32 %v1425, %v1415
  %v1427 = vadd.s32 %v1426, %v1417
  %v1428 = vand.u32 %v1405, 65535
  %v1429 = vshrl.u32 %v1405, 16
  %v1430 = vand.u32 %v1400, 65535
  %v1431 = vshrl.u32 %v1400, 16
  %v1432 = vmul.u32 %v1428, %v1430
  %v1433 = vmul.u32 %v1428, %v1431
  %v1434 = vmul.u32 %v1429, %v1430
  %v1435 = vmul.u32 %v1429, %v1431
  %v1436 = vshll.u32 %v1433, 16
  %v1437 = vshrl.u32 %v1433, 16
  %v1438 = vshll.u32 %v1434, 16
  %v1439 = vshrl.u32 %v1434, 16
  %vm1440 = vc.u32 %v1432, %v1436
  %v1441 = vsel %vm1440, 1, 0
  %v1442 = vadd.s32 %v1432, %v1436
  %v1443 = vadd.s32 %v1435, %v1441
  %vm1444 = vc.u32 %v1442, %v1438
  %v1445 = vsel %vm1444, 1, 0
  %v1446 = vadd.s32 %v1442, %v1438
  %v1447 = vadd.s32 %v1443, %v1445
  %v1448 = vadd.s32 %v1447, %v1437
  %v1449 = vadd.s32 %v1448, %v1439
  %v1450 = vmul.u32 %v1405, %v1396
  %v1451 = vadd.s32 %v1427, %v1446
  %vm1452 = vc.u32 %v1427, %v1446
  %v1453 = vadd.s32 %v1449, 1
  %v1454 = vsel %vm1452, %v1453, %v1449
  %v1455 = vadd.s32 %v1450, %v1454
  %v1456 = vadd.s32 %v1455, 536870912
  %v1457 = vshrl.u32 %v1456, 30
  %v1458 = vshll.u32 %v1457, 30
  %v1459 = vsub.s32 %v1455, %v1458
  %vm1460 = vcmp.lt.s32.totalorder %v1459, 0
  %v1461 = vsub.s32 0, %v1459
  %v1462 = vsel %vm1460, %v1461, %v1459
  %v1463 = vclz %v1462
  %v1464 = vsub.s32 %v1463, 2
  %vm1465 = vcmp.gt.s32.totalorder 0, %v1464
  %v1466 = vsel %vm1465, 0, %v1464
  %v1467 = vsub.s32 32, %v1466
  %v1468 = vshll.u32 %v1459, %v1466
  %v1469 = vshrl.u32 %v1451, %v1467
  %v1470 = vor.u32 %v1468, %v1469
  %v1471 = vsub.s32 4294967266, %v1466
  %v1472 = vadd.s32 %v1471, 127
  %v1473 = vshll.u32 %v1472, 23
  %v1474 = vor.u32 4788187, %v1473
  %v1475 = vand.u32 2147483647, %v1474
  %v1477 = vcvt.s32.f32 %v1470
  %v1478 = vmul.f32 %v1477, %v1475
  %v1479 = vxor.u32 %v1478, 2147483648
  %v1480 = vsel %vm1359, %v1479, %v1478
  %v1481 = vsub.s32 4, %v1457
  %v1482 = vsel %vm1359, %v1481, %v1457
  %v1483 = vsel %vm1358, %v270, %v1480
  %v1484 = vsel %vm1358, 0, %v1482
  %v1485 = vmul.f32 %v1483, %v1483
  %v1486 = vmul.f32 %v1485, -0.001358992
  %v1487 = vadd.f32 %v1486, 0.041655596
  %v1488 = vmul.f32 %v1485, %v1487
  %v1489 = vadd.f32 %v1488, -0.4999988
  %v1490 = vmul.f32 %v1485, %v1489
  %v1491 = vadd.f32 1.0, %v1490
  %v1492 = vmul.f32 %v1483, %v1483
  %v1493 = vmul.f32 %v1492, -0.00019511016
  %v1494 = vadd.f32 %v1493, 0.008332121
  %v1495 = vmul.f32 %v1492, %v1494
  %v1496 = vadd.f32 %v1495, -0.16666654
  %v1497 = vmul.f32 %v1492, %v1496
  %v1498 = vadd.f32 %v1497, 1.0
  %v1499 = vmul.f32 %v1498, %v1483
  %vm1500 = vweird.f32 %v270
  %v1501 = vand.u32 %v1484, 3
  %vm1502 = vcmp.lt.s32.totalorder %v1501, 2
  %vm1503 = vcmp.eq.s32.totalorder %v1501, 0
  %v1504 = vxor.u32 %v1499, 2147483648
  %v1505 = vsel %vm1503, %v1491, %v1504
  %vm1506 = vcmp.eq.s32.totalorder %v1501, 2
  %v1507 = vxor.u32 %v1491, 2147483648
  %v1508 = vsel %vm1506, %v1507, %v1499
  %v1509 = vsel %vm1502, %v1505, %v1508
  %v1510 = vsel %vm1500, nan, %v1509
  %v1511 = vand.u32 2147483647, %v271
  %vm1512 = vcmp.le.f32.partialorder %v1511, 0.7853982
  %vm1513 = vcmp.lt.s32.totalorder %v271, 0
  %v1514 = vand.u32 %v271, 2139095040
  %v1515 = vshrl.u32 %v1514, 23
  %v1516 = vsub.s32 %v1515, 127
  %v1517 = vand.u32 2147483647, %v271
  %v1518 = vand.u32 %v1517, 8388607
  %v1519 = vor.u32 %v1518, 8388608
  %v1520 = vsub.s32 0, %v1519
  %v1521 = vadd.s32 %v1516, 1
  %vm1522 = vcmp.gt.s32.totalorder %v1521, 0
  %v1523 = vsel %vm1522, %v1521, 0
  %v1524 = vshrl.u32 %v1523, 5
  %v1525 = vand.u32 %v1523, 31
  %v1526 = vsub.s32 32, %v1525
  %v1527 = vshrl.u32 683565275, %v1526
  %v1528 = vshll.u32 683565275, %v1525
  %v1529 = vshrl.u32 2475754826, %v1526
  %v1530 = vor.u32 %v1528, %v1529
  %v1531 = vshll.u32 2475754826, %v1525
  %v1532 = vshrl.u32 2131351028, %v1526
  %v1533 = vor.u32 %v1531, %v1532
  %v1534 = vshll.u32 2131351028, %v1525
  %v1535 = vshrl.u32 2102212464, %v1526
  %v1536 = vor.u32 %v1534, %v1535
  %v1537 = vshll.u32 2102212464, %v1525
  %v1538 = vshrl.u32 920167782, %v1526
  %v1539 = vor.u32 %v1537, %v1538
  %v1540 = vshll.u32 920167782, %v1525
  %v1541 = vshrl.u32 1326507024, %v1526
  %v1542 = vor.u32 %v1540, %v1541
  %vm1543 = vcmp.lt.s32.totalorder %v1524, 1
  %vm1544 = vcmp.lt.s32.totalorder %v1524, 2
  %vm1545 = vcmp.lt.s32.totalorder %v1524, 3
  %vm1546 = vcmp.lt.s32.totalorder %v1524, 4
  %v1547 = vsel %vm1543, %v1527, %v1530
  %v1548 = vsel %vm1546, %v1536, 2102212464
  %v1549 = vsel %vm1545, %v1533, %v1548
  %v1550 = vsel %vm1544, %v1547, %v1549
  %v1551 = vsel %vm1543, %v1530, %v1533
  %v1552 = vsel %vm1546, %v1539, 920167782
  %v1553 = vsel %vm1545, %v1536, %v1552
  %v1554 = vsel %vm1544, %v1551, %v1553
  %v1555 = vsel %vm1543, %v1533, %v1536
  %v1556 = vsel %vm1546, %v1542, 1326507024
  %v1557 = vsel %vm1545, %v1539, %v1556
  %v1558 = vsel %vm1544, %v1555, %v1557
  %v1559 = vshll.u32 %v1519, 8
  %v1560 = vand.u32 %v1559, 65535
  %v1561 = vshrl.u32 %v1559, 16
  %v1562 = vand.u32 %v1558, 65535
  %v1563 = vshrl.u32 %v1558, 16
  %v1564 = vmul.u32 %v1560, %v1562
  %v1565 = vmul.u32 %v1560, %v1563
  %v1566 = vmul.u32 %v1561, %v1562
  %v1567 = vmul.u32 %v1561, %v1563
  %v1568 = vshll.u32 %v1565, 16
  %v1569 = vshrl.u32 %v1565, 16
  %v1570 = vshll.u32 %v1566, 16
  %v1571 = vshrl.u32 %v1566, 16
  %vm1572 = vc.u32 %v1564, %v1568
  %v1573 = vsel %vm1572, 1, 0
  %v1574 = vadd.s32 %v1564, %v1568
  %v1575 = vadd.s32 %v1567, %v1573
  %vm1576 = vc.u32 %v1574, %v1570
  %v1577 = vsel %vm1576, 1, 0
  %v1578 = vadd.s32 %v1574, %v1570
  %v1579 = vadd.s32 %v1575, %v1577
  %v1580 = vadd.s32 %v1579, %v1569
  %v1581 = vadd.s32 %v1580, %v1571
  %v1582 = vand.u32 %v1559, 65535
  %v1583 = vshrl.u32 %v1559, 16
  %v1584 = vand.u32 %v1554, 65535
  %v1585 = vshrl.u32 %v1554, 16
  %v1586 = vmul.u32 %v1582, %v1584
  %v1587 = vmul.u32 %v1582, %v1585
  %v1588 = vmul.u32 %v1583, %v1584
  %v1589 = vmul.u32 %v1583, %v1585
  %v1590 = vshll.u32 %v1587, 16
  %v1591 = vshrl.u32 %v1587, 16
  %v1592 = vshll.u32 %v1588, 16
  %v1593 = vshrl.u32 %v1588, 16
  %vm1594 = vc.u32 %v1586, %v1590
  %v1595 = vsel %vm1594, 1, 0
  %v1596 = vadd.s32 %v1586, %v1590
  %v1597 = vadd.s32 %v1589, %v1595
  %vm1598 = vc.u32 %v1596, %v1592
  %v1599 = vsel %vm1598, 1, 0
  %v1600 = vadd.s32 %v1596, %v1592
  %v1601 = vadd.s32 %v1597, %v1599
  %v1602 = vadd.s32 %v1601, %v1591
  %v1603 = vadd.s32 %v1602, %v1593
  %v1604 = vmul.u32 %v1559, %v1550
  %v1605 = vadd.s32 %v1581, %v1600
  %vm1606 = vc.u32 %v1581, %v1600
  %v1607 = vadd.s32 %v1603, 1
  %v1608 = vsel %vm1606, %v1607, %v1603
  %v1609 = vadd.s32 %v1604, %v1608
  %v1610 = vadd.s32 %v1609, 536870912
  %v1611 = vshrl.u32 %v1610, 30
  %v1612 = vshll.u32 %v1611, 30
  %v1613 = vsub.s32 %v1609, %v1612
  %vm1614 = vcmp.lt.s32.totalorder %v1613, 0
  %v1615 = vsub.s32 0, %v1613
  %v1616 = vsel %vm1614, %v1615, %v1613
  %v1617 = vclz %v1616
  %v1618 = vsub.s32 %v1617, 2
  %vm1619 = vcmp.gt.s32.totalorder 0, %v1618
  %v1620 = vsel %vm1619, 0, %v1618
  %v1621 = vsub.s32 32, %v1620
  %v1622 = vshll.u32 %v1613, %v1620
  %v1623 = vshrl.u32 %v1605, %v1621
  %v1624 = vor.u32 %v1622, %v1623
  %v1625 = vsub.s32 4294967266, %v1620
  %v1626 = vadd.s32 %v1625, 127
  %v1627 = vshll.u32 %v1626, 23
  %v1628 = vor.u32 4788187, %v1627
  %v1629 = vand.u32 2147483647, %v1628
  %v1631 = vcvt.s32.f32 %v1624
  %v1632 = vmul.f32 %v1631, %v1629
  %v1633 = vxor.u32 %v1632, 2147483648
  %v1634 = vsel %vm1513, %v1633, %v1632
  %v1635 = vsub.s32 4, %v1611
  %v1636 = vsel %vm1513, %v1635, %v1611
  %v1637 = vsel %vm1512, %v271, %v1634
  %v1638 = vsel %vm1512, 0, %v1636
  %v1639 = vmul.f32 %v1637, %v1637
  %v1640 = vmul.f32 %v1639, -0.001358992
  %v1641 = vadd.f32 %v1640, 0.041655596
  %v1642 = vmul.f32 %v1639, %v1641
  %v1643 = vadd.f32 %v1642, -0.4999988
  %v1644 = vmul.f32 %v1639, %v1643
  %v1645 = vadd.f32 1.0, %v1644
  %v1646 = vmul.f32 %v1637, %v1637
  %v1647 = vmul.f32 %v1646, -0.00019511016
  %v1648 = vadd.f32 %v1647, 0.008332121
  %v1649 = vmul.f32 %v1646, %v1648
  %v1650 = vadd.f32 %v1649, -0.16666654
  %v1651 = vmul.f32 %v1646, %v1650
  %v1652 = vadd.f32 %v1651, 1.0
  %v1653 = vmul.f32 %v1652, %v1637
  %vm1654 = vweird.f32 %v271
  %v1655 = vand.u32 %v1638, 3
  %vm1656 = vcmp.lt.s32.totalorder %v1655, 2
  %vm1657 = vcmp.eq.s32.totalorder %v1655, 0
  %v1658 = vxor.u32 %v1653, 2147483648
  %v1659 = vsel %vm1657, %v1645, %v1658
  %vm1660 = vcmp.eq.s32.totalorder %v1655, 2
  %v1661 = vxor.u32 %v1645, 2147483648
  %v1662 = vsel %vm1660, %v1661, %v1653
  %v1663 = vsel %vm1656, %v1659, %v1662
  %v1664 = vsel %vm1654, nan, %v1663
  %v1665 = vand.u32 2147483647, %v272
  %vm1666 = vcmp.le.f32.partialorder %v1665, 0.7853982
  %vm1667 = vcmp.lt.s32.totalorder %v272, 0
  %v1668 = vand.u32 %v272, 2139095040
  %v1669 = vshrl.u32 %v1668, 23
  %v1670 = vsub.s32 %v1669, 127
  %v1671 = vand.u32 2147483647, %v272
  %v1672 = vand.u32 %v1671, 8388607
  %v1673 = vor.u32 %v1672, 8388608
  %v1674 = vsub.s32 0, %v1673
  %v1675 = vadd.s32 %v1670, 1
  %vm1676 = vcmp.gt.s32.totalorder %v1675, 0
  %v1677 = vsel %vm1676, %v1675, 0
  %v1678 = vshrl.u32 %v1677, 5
  %v1679 = vand.u32 %v1677, 31
  %v1680 = vsub.s32 32, %v1679
  %v1681 = vshrl.u32 683565275, %v1680
  %v1682 = vshll.u32 683565275, %v1679
  %v1683 = vshrl.u32 2475754826, %v1680
  %v1684 = vor.u32 %v1682, %v1683
  %v1685 = vshll.u32 2475754826, %v1679
  %v1686 = vshrl.u32 2131351028, %v1680
  %v1687 = vor.u32 %v1685, %v1686
  %v1688 = vshll.u32 2131351028, %v1679
  %v1689 = vshrl.u32 2102212464, %v1680
  %v1690 = vor.u32 %v1688, %v1689
  %v1691 = vshll.u32 2102212464, %v1679
  %v1692 = vshrl.u32 920167782, %v1680
  %v1693 = vor.u32 %v1691, %v1692
  %v1694 = vshll.u32 920167782, %v1679
  %v1695 = vshrl.u32 1326507024, %v1680
  %v1696 = vor.u32 %v1694, %v1695
  %vm1697 = vcmp.lt.s32.totalorder %v1678, 1
  %vm1698 = vcmp.lt.s32.totalorder %v1678, 2
  %vm1699 = vcmp.lt.s32.totalorder %v1678, 3
  %vm1700 = vcmp.lt.s32.totalorder %v1678, 4
  %v1701 = vsel %vm1697, %v1681, %v1684
  %v1702 = vsel %vm1700, %v1690, 2102212464
  %v1703 = vsel %vm1699, %v1687, %v1702
  %v1704 = vsel %vm1698, %v1701, %v1703
  %v1705 = vsel %vm1697, %v1684, %v1687
  %v1706 = vsel %vm1700, %v1693, 920167782
  %v1707 = vsel %vm1699, %v1690, %v1706
  %v1708 = vsel %vm1698, %v1705, %v1707
  %v1709 = vsel %vm1697, %v1687, %v1690
  %v1710 = vsel %vm1700, %v1696, 1326507024
  %v1711 = vsel %vm1699, %v1693, %v1710
  %v1712 = vsel %vm1698, %v1709, %v1711
  %v1713 = vshll.u32 %v1673, 8
  %v1714 = vand.u32 %v1713, 65535
  %v1715 = vshrl.u32 %v1713, 16
  %v1716 = vand.u32 %v1712, 65535
  %v1717 = vshrl.u32 %v1712, 16
  %v1718 = vmul.u32 %v1714, %v1716
  %v1719 = vmul.u32 %v1714, %v1717
  %v1720 = vmul.u32 %v1715, %v1716
  %v1721 = vmul.u32 %v1715, %v1717
  %v1722 = vshll.u32 %v1719, 16
  %v1723 = vshrl.u32 %v1719, 16
  %v1724 = vshll.u32 %v1720, 16
  %v1725 = vshrl.u32 %v1720, 16
  %vm1726 = vc.u32 %v1718, %v1722
  %v1727 = vsel %vm1726, 1, 0
  %v1728 = vadd.s32 %v1718, %v1722
  %v1729 = vadd.s32 %v1721, %v1727
  %vm1730 = vc.u32 %v1728, %v1724
  %v1731 = vsel %vm1730, 1, 0
  %v1732 = vadd.s32 %v1728, %v1724
  %v1733 = vadd.s32 %v1729, %v1731
  %v1734 = vadd.s32 %v1733, %v1723
  %v1735 = vadd.s32 %v1734, %v1725
  %v1736 = vand.u32 %v1713, 65535
  %v1737 = vshrl.u32 %v1713, 16
  %v1738 = vand.u32 %v1708, 65535
  %v1739 = vshrl.u32 %v1708, 16
  %v1740 = vmul.u32 %v1736, %v1738
  %v1741 = vmul.u32 %v1736, %v1739
  %v1742 = vmul.u32 %v1737, %v1738
  %v1743 = vmul.u32 %v1737, %v1739
  %v1744 = vshll.u32 %v1741, 16
  %v1745 = vshrl.u32 %v1741, 16
  %v1746 = vshll.u32 %v1742, 16
  %v1747 = vshrl.u32 %v1742, 16
  %vm1748 = vc.u32 %v1740, %v1744
  %v1749 = vsel %vm1748, 1, 0
  %v1750 = vadd.s32 %v1740, %v1744
  %v1751 = vadd.s32 %v1743, %v1749
  %vm1752 = vc.u32 %v1750, %v1746
  %v1753 = vsel %vm1752, 1, 0
  %v1754 = vadd.s32 %v1750, %v1746
  %v1755 = vadd.s32 %v1751, %v1753
  %v1756 = vadd.s32 %v1755, %v1745
  %v1757 = vadd.s32 %v1756, %v1747
  %v1758 = vmul.u32 %v1713, %v1704
  %v1759 = vadd.s32 %v1735, %v1754
  %vm1760 = vc.u32 %v1735, %v1754
  %v1761 = vadd.s32 %v1757, 1
  %v1762 = vsel %vm1760, %v1761, %v1757
  %v1763 = vadd.s32 %v1758, %v1762
  %v1764 = vadd.s32 %v1763, 536870912
  %v1765 = vshrl.u32 %v1764, 30
  %v1766 = vshll.u32 %v1765, 30
  %v1767 = vsub.s32 %v1763, %v1766
  %vm1768 = vcmp.lt.s32.totalorder %v1767, 0
  %v1769 = vsub.s32 0, %v1767
  %v1770 = vsel %vm1768, %v1769, %v1767
  %v1771 = vclz %v1770
  %v1772 = vsub.s32 %v1771, 2
  %vm1773 = vcmp.gt.s32.totalorder 0, %v1772
  %v1774 = vsel %vm1773, 0, %v1772
  %v1775 = vsub.s32 32, %v1774
  %v1776 = vshll.u32 %v1767, %v1774
  %v1777 = vshrl.u32 %v1759, %v1775
  %v1778 = vor.u32 %v1776, %v1777
  %v1779 = vsub.s32 4294967266, %v1774
  %v1780 = vadd.s32 %v1779, 127
  %v1781 = vshll.u32 %v1780, 23
  %v1782 = vor.u32 4788187, %v1781
  %v1783 = vand.u32 2147483647, %v1782
  %v1785 = vcvt.s32.f32 %v1778
  %v1786 = vmul.f32 %v1785, %v1783
  %v1787 = vxor.u32 %v1786, 2147483648
  %v1788 = vsel %vm1667, %v1787, %v1786
  %v1789 = vsub.s32 4, %v1765
  %v1790 = vsel %vm1667, %v1789, %v1765
  %v1791 = vsel %vm1666, %v272, %v1788
  %v1792 = vsel %vm1666, 0, %v1790
  %v1793 = vmul.f32 %v1791, %v1791
  %v1794 = vmul.f32 %v1793, -0.001358992
  %v1795 = vadd.f32 %v1794, 0.041655596
  %v1796 = vmul.f32 %v1793, %v1795
  %v1797 = vadd.f32 %v1796, -0.4999988
  %v1798 = vmul.f32 %v1793, %v1797
  %v1799 = vadd.f32 1.0, %v1798
  %v1800 = vmul.f32 %v1791, %v1791
  %v1801 = vmul.f32 %v1800, -0.00019511016
  %v1802 = vadd.f32 %v1801, 0.008332121
  %v1803 = vmul.f32 %v1800, %v1802
  %v1804 = vadd.f32 %v1803, -0.16666654
  %v1805 = vmul.f32 %v1800, %v1804
  %v1806 = vadd.f32 %v1805, 1.0
  %v1807 = vmul.f32 %v1806, %v1791
  %vm1808 = vweird.f32 %v272
  %v1809 = vand.u32 %v1792, 3
  %vm1810 = vcmp.lt.s32.totalorder %v1809, 2
  %vm1811 = vcmp.eq.s32.totalorder %v1809, 0
  %v1812 = vxor.u32 %v1807, 2147483648
  %v1813 = vsel %vm1811, %v1799, %v1812
  %vm1814 = vcmp.eq.s32.totalorder %v1809, 2
  %v1815 = vxor.u32 %v1799, 2147483648
  %v1816 = vsel %vm1814, %v1815, %v1807
  %v1817 = vsel %vm1810, %v1813, %v1816
  %v1818 = vsel %vm1808, nan, %v1817
  %v1819 = vand.u32 2147483647, %v273
  %vm1820 = vcmp.le.f32.partialorder %v1819, 0.7853982
  %vm1821 = vcmp.lt.s32.totalorder %v273, 0
  %v1822 = vand.u32 %v273, 2139095040
  %v1823 = vshrl.u32 %v1822, 23
  %v1824 = vsub.s32 %v1823, 127
  %v1825 = vand.u32 2147483647, %v273
  %v1826 = vand.u32 %v1825, 8388607
  %v1827 = vor.u32 %v1826, 8388608
  %v1828 = vsub.s32 0, %v1827
  %v1829 = vadd.s32 %v1824, 1
  %vm1830 = vcmp.gt.s32.totalorder %v1829, 0
  %v1831 = vsel %vm1830, %v1829, 0
  %v1832 = vshrl.u32 %v1831, 5
  %v1833 = vand.u32 %v1831, 31
  %v1834 = vsub.s32 32, %v1833
  %v1835 = vshrl.u32 683565275, %v1834
  %v1836 = vshll.u32 683565275, %v1833
  %v1837 = vshrl.u32 2475754826, %v1834
  %v1838 = vor.u32 %v1836, %v1837
  %v1839 = vshll.u32 2475754826, %v1833
  %v1840 = vshrl.u32 2131351028, %v1834
  %v1841 = vor.u32 %v1839, %v1840
  %v1842 = vshll.u32 2131351028, %v1833
  %v1843 = vshrl.u32 2102212464, %v1834
  %v1844 = vor.u32 %v1842, %v1843
  %v1845 = vshll.u32 2102212464, %v1833
  %v1846 = vshrl.u32 920167782, %v1834
  %v1847 = vor.u32 %v1845, %v1846
  %v1848 = vshll.u32 920167782, %v1833
  %v1849 = vshrl.u32 1326507024, %v1834
  %v1850 = vor.u32 %v1848, %v1849
  %vm1851 = vcmp.lt.s32.totalorder %v1832, 1
  %vm1852 = vcmp.lt.s32.totalorder %v1832, 2
  %vm1853 = vcmp.lt.s32.totalorder %v1832, 3
  %vm1854 = vcmp.lt.s32.totalorder %v1832, 4
  %v1855 = vsel %vm1851, %v1835, %v1838
  %v1856 = vsel %vm1854, %v1844, 2102212464
  %v1857 = vsel %vm1853, %v1841, %v1856
  %v1858 = vsel %vm1852, %v1855, %v1857
  %v1859 = vsel %vm1851, %v1838, %v1841
  %v1860 = vsel %vm1854, %v1847, 920167782
  %v1861 = vsel %vm1853, %v1844, %v1860
  %v1862 = vsel %vm1852, %v1859, %v1861
  %v1863 = vsel %vm1851, %v1841, %v1844
  %v1864 = vsel %vm1854, %v1850, 1326507024
  %v1865 = vsel %vm1853, %v1847, %v1864
  %v1866 = vsel %vm1852, %v1863, %v1865
  %v1867 = vshll.u32 %v1827, 8
  %v1868 = vand.u32 %v1867, 65535
  %v1869 = vshrl.u32 %v1867, 16
  %v1870 = vand.u32 %v1866, 65535
  %v1871 = vshrl.u32 %v1866, 16
  %v1872 = vmul.u32 %v1868, %v1870
  %v1873 = vmul.u32 %v1868, %v1871
  %v1874 = vmul.u32 %v1869, %v1870
  %v1875 = vmul.u32 %v1869, %v1871
  %v1876 = vshll.u32 %v1873, 16
  %v1877 = vshrl.u32 %v1873, 16
  %v1878 = vshll.u32 %v1874, 16
  %v1879 = vshrl.u32 %v1874, 16
  %vm1880 = vc.u32 %v1872, %v1876
  %v1881 = vsel %vm1880, 1, 0
  %v1882 = vadd.s32 %v1872, %v1876
  %v1883 = vadd.s32 %v1875, %v1881
  %vm1884 = vc.u32 %v1882, %v1878
  %v1885 = vsel %vm1884, 1, 0
  %v1886 = vadd.s32 %v1882, %v1878
  %v1887 = vadd.s32 %v1883, %v1885
  %v1888 = vadd.s32 %v1887, %v1877
  %v1889 = vadd.s32 %v1888, %v1879
  %v1890 = vand.u32 %v1867, 65535
  %v1891 = vshrl.u32 %v1867, 16
  %v1892 = vand.u32 %v1862, 65535
  %v1893 = vshrl.u32 %v1862, 16
  %v1894 = vmul.u32 %v1890, %v1892
  %v1895 = vmul.u32 %v1890, %v1893
  %v1896 = vmul.u32 %v1891, %v1892
  %v1897 = vmul.u32 %v1891, %v1893
  %v1898 = vshll.u32 %v1895, 16
  %v1899 = vshrl.u32 %v1895, 16
  %v1900 = vshll.u32 %v1896, 16
  %v1901 = vshrl.u32 %v1896, 16
  %vm1902 = vc.u32 %v1894, %v1898
  %v1903 = vsel %vm1902, 1, 0
  %v1904 = vadd.s32 %v1894, %v1898
  %v1905 = vadd.s32 %v1897, %v1903
  %vm1906 = vc.u32 %v1904, %v1900
  %v1907 = vsel %vm1906, 1, 0
  %v1908 = vadd.s32 %v1904, %v1900
  %v1909 = vadd.s32 %v1905, %v1907
  %v1910 = vadd.s32 %v1909, %v1899
  %v1911 = vadd.s32 %v1910, %v1901
  %v1912 = vmul.u32 %v1867, %v1858
  %v1913 = vadd.s32 %v1889, %v1908
  %vm1914 = vc.u32 %v1889, %v1908
  %v1915 = vadd.s32 %v1911, 1
  %v1916 = vsel %vm1914, %v1915, %v1911
  %v1917 = vadd.s32 %v1912, %v1916
  %v1918 = vadd.s32 %v1917, 536870912
  %v1919 = vshrl.u32 %v1918, 30
  %v1920 = vshll.u32 %v1919, 30
  %v1921 = vsub.s32 %v1917, %v1920
  %vm1922 = vcmp.lt.s32.totalorder %v1921, 0
  %v1923 = vsub.s32 0, %v1921
  %v1924 = vsel %vm1922, %v1923, %v1921
  %v1925 = vclz %v1924
  %v1926 = vsub.s32 %v1925, 2
  %vm1927 = vcmp.gt.s32.totalorder 0, %v1926
  %v1928 = vsel %vm1927, 0, %v1926
  %v1929 = vsub.s32 32, %v1928
  %v1930 = vshll.u32 %v1921, %v1928
  %v1931 = vshrl.u32 %v1913, %v1929
  %v1932 = vor.u32 %v1930, %v1931
  %v1933 = vsub.s32 4294967266, %v1928
  %v1934 = vadd.s32 %v1933, 127
  %v1935 = vshll.u32 %v1934, 23
  %v1936 = vor.u32 4788187, %v1935
  %v1937 = vand.u32 2147483647, %v1936
  %v1939 = vcvt.s32.f32 %v1932
  %v1940 = vmul.f32 %v1939, %v1937
  %v1941 = vxor.u32 %v1940, 2147483648
  %v1942 = vsel %vm1821, %v1941, %v1940
  %v1943 = vsub.s32 4, %v1919
  %v1944 = vsel %vm1821, %v1943, %v1919
  %v1945 = vsel %vm1820, %v273, %v1942
  %v1946 = vsel %vm1820, 0, %v1944
  %v1947 = vmul.f32 %v1945, %v1945
  %v1948 = vmul.f32 %v1947, -0.001358992
  %v1949 = vadd.f32 %v1948, 0.041655596
  %v1950 = vmul.f32 %v1947, %v1949
  %v1951 = vadd.f32 %v1950, -0.4999988
  %v1952 = vmul.f32 %v1947, %v1951
  %v1953 = vadd.f32 1.0, %v1952
  %v1954 = vmul.f32 %v1945, %v1945
  %v1955 = vmul.f32 %v1954, -0.00019511016
  %v1956 = vadd.f32 %v1955, 0.008332121
  %v1957 = vmul.f32 %v1954, %v1956
  %v1958 = vadd.f32 %v1957, -0.16666654
  %v1959 = vmul.f32 %v1954, %v1958
  %v1960 = vadd.f32 %v1959, 1.0
  %v1961 = vmul.f32 %v1960, %v1945
  %vm1962 = vweird.f32 %v273
  %v1963 = vand.u32 %v1946, 3
  %vm1964 = vcmp.lt.s32.totalorder %v1963, 2
  %vm1965 = vcmp.eq.s32.totalorder %v1963, 0
  %v1966 = vxor.u32 %v1961, 2147483648
  %v1967 = vsel %vm1965, %v1953, %v1966
  %vm1968 = vcmp.eq.s32.totalorder %v1963, 2
  %v1969 = vxor.u32 %v1953, 2147483648
  %v1970 = vsel %vm1968, %v1969, %v1961
  %v1971 = vsel %vm1964, %v1967, %v1970
  %v1972 = vsel %vm1962, nan, %v1971
  %v1973 = vand.u32 2147483647, %v274
  %vm1974 = vcmp.le.f32.partialorder %v1973, 0.7853982
  %vm1975 = vcmp.lt.s32.totalorder %v274, 0
  %v1976 = vand.u32 %v274, 2139095040
  %v1977 = vshrl.u32 %v1976, 23
  %v1978 = vsub.s32 %v1977, 127
  %v1979 = vand.u32 2147483647, %v274
  %v1980 = vand.u32 %v1979, 8388607
  %v1981 = vor.u32 %v1980, 8388608
  %v1982 = vsub.s32 0, %v1981
  %v1983 = vadd.s32 %v1978, 1
  %vm1984 = vcmp.gt.s32.totalorder %v1983, 0
  %v1985 = vsel %vm1984, %v1983, 0
  %v1986 = vshrl.u32 %v1985, 5
  %v1987 = vand.u32 %v1985, 31
  %v1988 = vsub.s32 32, %v1987
  %v1989 = vshrl.u32 683565275, %v1988
  %v1990 = vshll.u32 683565275, %v1987
  %v1991 = vshrl.u32 2475754826, %v1988
  %v1992 = vor.u32 %v1990, %v1991
  %v1993 = vshll.u32 2475754826, %v1987
  %v1994 = vshrl.u32 2131351028, %v1988
  %v1995 = vor.u32 %v1993, %v1994
  %v1996 = vshll.u32 2131351028, %v1987
  %v1997 = vshrl.u32 2102212464, %v1988
  %v1998 = vor.u32 %v1996, %v1997
  %v1999 = vshll.u32 2102212464, %v1987
  %v2000 = vshrl.u32 920167782, %v1988
  %v2001 = vor.u32 %v1999, %v2000
  %v2002 = vshll.u32 920167782, %v1987
  %v2003 = vshrl.u32 1326507024, %v1988
  %v2004 = vor.u32 %v2002, %v2003
  %vm2005 = vcmp.lt.s32.totalorder %v1986, 1
  %vm2006 = vcmp.lt.s32.totalorder %v1986, 2
  %vm2007 = vcmp.lt.s32.totalorder %v1986, 3
  %vm2008 = vcmp.lt.s32.totalorder %v1986, 4
  %v2009 = vsel %vm2005, %v1989, %v1992
  %v2010 = vsel %vm2008, %v1998, 2102212464
  %v2011 = vsel %vm2007, %v1995, %v2010
  %v2012 = vsel %vm2006, %v2009, %v2011
  %v2013 = vsel %vm2005, %v1992, %v1995
  %v2014 = vsel %vm2008, %v2001, 920167782
  %v2015 = vsel %vm2007, %v1998, %v2014
  %v2016 = vsel %vm2006, %v2013, %v2015
  %v2017 = vsel %vm2005, %v1995, %v1998
  %v2018 = vsel %vm2008, %v2004, 1326507024
  %v2019 = vsel %vm2007, %v2001, %v2018
  %v2020 = vsel %vm2006, %v2017, %v2019
  %v2021 = vshll.u32 %v1981, 8
  %v2022 = vand.u32 %v2021, 65535
  %v2023 = vshrl.u32 %v2021, 16
  %v2024 = vand.u32 %v2020, 65535
  %v2025 = vshrl.u32 %v2020, 16
  %v2026 = vmul.u32 %v2022, %v2024
  %v2027 = vmul.u32 %v2022, %v2025
  %v2028 = vmul.u32 %v2023, %v2024
  %v2029 = vmul.u32 %v2023, %v2025
  %v2030 = vshll.u32 %v2027, 16
  %v2031 = vshrl.u32 %v2027, 16
  %v2032 = vshll.u32 %v2028, 16
  %v2033 = vshrl.u32 %v2028, 16
  %vm2034 = vc.u32 %v2026, %v2030
  %v2035 = vsel %vm2034, 1, 0
  %v2036 = vadd.s32 %v2026, %v2030
  %v2037 = vadd.s32 %v2029, %v2035
  %vm2038 = vc.u32 %v2036, %v2032
  %v2039 = vsel %vm2038, 1, 0
  %v2040 = vadd.s32 %v2036, %v2032
  %v2041 = vadd.s32 %v2037, %v2039
  %v2042 = vadd.s32 %v2041, %v2031
  %v2043 = vadd.s32 %v2042, %v2033
  %v2044 = vand.u32 %v2021, 65535
  %v2045 = vshrl.u32 %v2021, 16
  %v2046 = vand.u32 %v2016, 65535
  %v2047 = vshrl.u32 %v2016, 16
  %v2048 = vmul.u32 %v2044, %v2046
  %v2049 = vmul.u32 %v2044, %v2047
  %v2050 = vmul.u32 %v2045, %v2046
  %v2051 = vmul.u32 %v2045, %v2047
  %v2052 = vshll.u32 %v2049, 16
  %v2053 = vshrl.u32 %v2049, 16
  %v2054 = vshll.u32 %v2050, 16
  %v2055 = vshrl.u32 %v2050, 16
  %vm2056 = vc.u32 %v2048, %v2052
  %v2057 = vsel %vm2056, 1, 0
  %v2058 = vadd.s32 %v2048, %v2052
  %v2059 = vadd.s32 %v2051, %v2057
  %vm2060 = vc.u32 %v2058, %v2054
  %v2061 = vsel %vm2060, 1, 0
  %v2062 = vadd.s32 %v2058, %v2054
  %v2063 = vadd.s32 %v2059, %v2061
  %v2064 = vadd.s32 %v2063, %v2053
  %v2065 = vadd.s32 %v2064, %v2055
  %v2066 = vmul.u32 %v2021, %v2012
  %v2067 = vadd.s32 %v2043, %v2062
  %vm2068 = vc.u32 %v2043, %v2062
  %v2069 = vadd.s32 %v2065, 1
  %v2070 = vsel %vm2068, %v2069, %v2065
  %v2071 = vadd.s32 %v2066, %v2070
  %v2072 = vadd.s32 %v2071, 536870912
  %v2073 = vshrl.u32 %v2072, 30
  %v2074 = vshll.u32 %v2073, 30
  %v2075 = vsub.s32 %v2071, %v2074
  %vm2076 = vcmp.lt.s32.totalorder %v2075, 0
  %v2077 = vsub.s32 0, %v2075
  %v2078 = vsel %vm2076, %v2077, %v2075
  %v2079 = vclz %v2078
  %v2080 = vsub.s32 %v2079, 2
  %vm2081 = vcmp.gt.s32.totalorder 0, %v2080
  %v2082 = vsel %vm2081, 0, %v2080
  %v2083 = vsub.s32 32, %v2082
  %v2084 = vshll.u32 %v2075, %v2082
  %v2085 = vshrl.u32 %v2067, %v2083
  %v2086 = vor.u32 %v2084, %v2085
  %v2087 = vsub.s32 4294967266, %v2082
  %v2088 = vadd.s32 %v2087, 127
  %v2089 = vshll.u32 %v2088, 23
  %v2090 = vor.u32 4788187, %v2089
  %v2091 = vand.u32 2147483647, %v2090
  %v2093 = vcvt.s32.f32 %v2086
  %v2094 = vmul.f32 %v2093, %v2091
  %v2095 = vxor.u32 %v2094, 2147483648
  %v2096 = vsel %vm1975, %v2095, %v2094
  %v2097 = vsub.s32 4, %v2073
  %v2098 = vsel %vm1975, %v2097, %v2073
  %v2099 = vsel %vm1974, %v274, %v2096
  %v2100 = vsel %vm1974, 0, %v2098
  %v2101 = vmul.f32 %v2099, %v2099
  %v2102 = vmul.f32 %v2101, -0.001358992
  %v2103 = vadd.f32 %v2102, 0.041655596
  %v2104 = vmul.f32 %v2101, %v2103
  %v2105 = vadd.f32 %v2104, -0.4999988
  %v2106 = vmul.f32 %v2101, %v2105
  %v2107 = vadd.f32 1.0, %v2106
  %v2108 = vmul.f32 %v2099, %v2099
  %v2109 = vmul.f32 %v2108, -0.00019511016
  %v2110 = vadd.f32 %v2109, 0.008332121
  %v2111 = vmul.f32 %v2108, %v2110
  %v2112 = vadd.f32 %v2111, -0.16666654
  %v2113 = vmul.f32 %v2108, %v2112
  %v2114 = vadd.f32 %v2113, 1.0
  %v2115 = vmul.f32 %v2114, %v2099
  %vm2116 = vweird.f32 %v274
  %v2117 = vand.u32 %v2100, 3
  %vm2118 = vcmp.lt.s32.totalorder %v2117, 2
  %vm2119 = vcmp.eq.s32.totalorder %v2117, 0
  %v2120 = vxor.u32 %v2115, 2147483648
  %v2121 = vsel %vm2119, %v2107, %v2120
  %vm2122 = vcmp.eq.s32.totalorder %v2117, 2
  %v2123 = vxor.u32 %v2107, 2147483648
  %v2124 = vsel %vm2122, %v2123, %v2115
  %v2125 = vsel %vm2118, %v2121, %v2124
  %v2126 = vsel %vm2116, nan, %v2125
  %v2127 = vand.u32 2147483647, %v275
  %vm2128 = vcmp.le.f32.partialorder %v2127, 0.7853982
  %vm2129 = vcmp.lt.s32.totalorder %v275, 0
  %v2130 = vand.u32 %v275, 2139095040
  %v2131 = vshrl.u32 %v2130, 23
  %v2132 = vsub.s32 %v2131, 127
  %v2133 = vand.u32 2147483647, %v275
  %v2134 = vand.u32 %v2133, 8388607
  %v2135 = vor.u32 %v2134, 8388608
  %v2136 = vsub.s32 0, %v2135
  %v2137 = vadd.s32 %v2132, 1
  %vm2138 = vcmp.gt.s32.totalorder %v2137, 0
  %v2139 = vsel %vm2138, %v2137, 0
  %v2140 = vshrl.u32 %v2139, 5
  %v2141 = vand.u32 %v2139, 31
  %v2142 = vsub.s32 32, %v2141
  %v2143 = vshrl.u32 683565275, %v2142
  %v2144 = vshll.u32 683565275, %v2141
  %v2145 = vshrl.u32 2475754826, %v2142
  %v2146 = vor.u32 %v2144, %v2145
  %v2147 = vshll.u32 2475754826, %v2141
  %v2148 = vshrl.u32 2131351028, %v2142
  %v2149 = vor.u32 %v2147, %v2148
  %v2150 = vshll.u32 2131351028, %v2141
  %v2151 = vshrl.u32 2102212464, %v2142
  %v2152 = vor.u32 %v2150, %v2151
  %v2153 = vshll.u32 2102212464, %v2141
  %v2154 = vshrl.u32 920167782, %v2142
  %v2155 = vor.u32 %v2153, %v2154
  %v2156 = vshll.u32 920167782, %v2141
  %v2157 = vshrl.u32 1326507024, %v2142
  %v2158 = vor.u32 %v2156, %v2157
  %vm2159 = vcmp.lt.s32.totalorder %v2140, 1
  %vm2160 = vcmp.lt.s32.totalorder %v2140, 2
  %vm2161 = vcmp.lt.s32.totalorder %v2140, 3
  %vm2162 = vcmp.lt.s32.totalorder %v2140, 4
  %v2163 = vsel %vm2159, %v2143, %v2146
  %v2164 = vsel %vm2162, %v2152, 2102212464
  %v2165 = vsel %vm2161, %v2149, %v2164
  %v2166 = vsel %vm2160, %v2163, %v2165
  %v2167 = vsel %vm2159, %v2146, %v2149
  %v2168 = vsel %vm2162, %v2155, 920167782
  %v2169 = vsel %vm2161, %v2152, %v2168
  %v2170 = vsel %vm2160, %v2167, %v2169
  %v2171 = vsel %vm2159, %v2149, %v2152
  %v2172 = vsel %vm2162, %v2158, 1326507024
  %v2173 = vsel %vm2161, %v2155, %v2172
  %v2174 = vsel %vm2160, %v2171, %v2173
  %v2175 = vshll.u32 %v2135, 8
  %v2176 = vand.u32 %v2175, 65535
  %v2177 = vshrl.u32 %v2175, 16
  %v2178 = vand.u32 %v2174, 65535
  %v2179 = vshrl.u32 %v2174, 16
  %v2180 = vmul.u32 %v2176, %v2178
  %v2181 = vmul.u32 %v2176, %v2179
  %v2182 = vmul.u32 %v2177, %v2178
  %v2183 = vmul.u32 %v2177, %v2179
  %v2184 = vshll.u32 %v2181, 16
  %v2185 = vshrl.u32 %v2181, 16
  %v2186 = vshll.u32 %v2182, 16
  %v2187 = vshrl.u32 %v2182, 16
  %vm2188 = vc.u32 %v2180, %v2184
  %v2189 = vsel %vm2188, 1, 0
  %v2190 = vadd.s32 %v2180, %v2184
  %v2191 = vadd.s32 %v2183, %v2189
  %vm2192 = vc.u32 %v2190, %v2186
  %v2193 = vsel %vm2192, 1, 0
  %v2194 = vadd.s32 %v2190, %v2186
  %v2195 = vadd.s32 %v2191, %v2193
  %v2196 = vadd.s32 %v2195, %v2185
  %v2197 = vadd.s32 %v2196, %v2187
  %v2198 = vand.u32 %v2175, 65535
  %v2199 = vshrl.u32 %v2175, 16
  %v2200 = vand.u32 %v2170, 65535
  %v2201 = vshrl.u32 %v2170, 16
  %v2202 = vmul.u32 %v2198, %v2200
  %v2203 = vmul.u32 %v2198, %v2201
  %v2204 = vmul.u32 %v2199, %v2200
  %v2205 = vmul.u32 %v2199, %v2201
  %v2206 = vshll.u32 %v2203, 16
  %v2207 = vshrl.u32 %v2203, 16
  %v2208 = vshll.u32 %v2204, 16
  %v2209 = vshrl.u32 %v2204, 16
  %vm2210 = vc.u32 %v2202, %v2206
  %v2211 = vsel %vm2210, 1, 0
  %v2212 = vadd.s32 %v2202, %v2206
  %v2213 = vadd.s32 %v2205, %v2211
  %vm2214 = vc.u32 %v2212, %v2208
  %v2215 = vsel %vm2214, 1, 0
  %v2216 = vadd.s32 %v2212, %v2208
  %v2217 = vadd.s32 %v2213, %v2215
  %v2218 = vadd.s32 %v2217, %v2207
  %v2219 = vadd.s32 %v2218, %v2209
  %v2220 = vmul.u32 %v2175, %v2166
  %v2221 = vadd.s32 %v2197, %v2216
  %vm2222 = vc.u32 %v2197, %v2216
  %v2223 = vadd.s32 %v2219, 1
  %v2224 = vsel %vm2222, %v2223, %v2219
  %v2225 = vadd.s32 %v2220, %v2224
  %v2226 = vadd.s32 %v2225, 536870912
  %v2227 = vshrl.u32 %v2226, 30
  %v2228 = vshll.u32 %v2227, 30
  %v2229 = vsub.s32 %v2225, %v2228
  %vm2230 = vcmp.lt.s32.totalorder %v2229, 0
  %v2231 = vsub.s32 0, %v2229
  %v2232 = vsel %vm2230, %v2231, %v2229
  %v2233 = vclz %v2232
  %v2234 = vsub.s32 %v2233, 2
  %vm2235 = vcmp.gt.s32.totalorder 0, %v2234
  %v2236 = vsel %vm2235, 0, %v2234
  %v2237 = vsub.s32 32, %v2236
  %v2238 = vshll.u32 %v2229, %v2236
  %v2239 = vshrl.u32 %v2221, %v2237
  %v2240 = vor.u32 %v2238, %v2239
  %v2241 = vsub.s32 4294967266, %v2236
  %v2242 = vadd.s32 %v2241, 127
  %v2243 = vshll.u32 %v2242, 23
  %v2244 = vor.u32 4788187, %v2243
  %v2245 = vand.u32 2147483647, %v2244
  %v2247 = vcvt.s32.f32 %v2240
  %v2248 = vmul.f32 %v2247, %v2245
  %v2249 = vxor.u32 %v2248, 2147483648
  %v2250 = vsel %vm2129, %v2249, %v2248
  %v2251 = vsub.s32 4, %v2227
  %v2252 = vsel %vm2129, %v2251, %v2227
  %v2253 = vsel %vm2128, %v275, %v2250
  %v2254 = vsel %vm2128, 0, %v2252
  %v2255 = vmul.f32 %v2253, %v2253
  %v2256 = vmul.f32 %v2255, -0.001358992
  %v2257 = vadd.f32 %v2256, 0.041655596
  %v2258 = vmul.f32 %v2255, %v2257
  %v2259 = vadd.f32 %v2258, -0.4999988
  %v2260 = vmul.f32 %v2255, %v2259
  %v2261 = vadd.f32 1.0, %v2260
  %v2262 = vmul.f32 %v2253, %v2253
  %v2263 = vmul.f32 %v2262, -0.00019511016
  %v2264 = vadd.f32 %v2263, 0.008332121
  %v2265 = vmul.f32 %v2262, %v2264
  %v2266 = vadd.f32 %v2265, -0.16666654
  %v2267 = vmul.f32 %v2262, %v2266
  %v2268 = vadd.f32 %v2267, 1.0
  %v2269 = vmul.f32 %v2268, %v2253
  %vm2270 = vweird.f32 %v275
  %v2271 = vand.u32 %v2254, 3
  %vm2272 = vcmp.lt.s32.totalorder %v2271, 2
  %vm2273 = vcmp.eq.s32.totalorder %v2271, 0
  %v2274 = vxor.u32 %v2269, 2147483648
  %v2275 = vsel %vm2273, %v2261, %v2274
  %vm2276 = vcmp.eq.s32.totalorder %v2271, 2
  %v2277 = vxor.u32 %v2261, 2147483648
  %v2278 = vsel %vm2276, %v2277, %v2269
  %v2279 = vsel %vm2272, %v2275, %v2278
  %v2280 = vsel %vm2270, nan, %v2279
  %v2281 = vand.u32 2147483647, %v276
  %vm2282 = vcmp.le.f32.partialorder %v2281, 0.7853982
  %vm2283 = vcmp.lt.s32.totalorder %v276, 0
  %v2284 = vand.u32 %v276, 2139095040
  %v2285 = vshrl.u32 %v2284, 23
  %v2286 = vsub.s32 %v2285, 127
  %v2287 = vand.u32 2147483647, %v276
  %v2288 = vand.u32 %v2287, 8388607
  %v2289 = vor.u32 %v2288, 8388608
  %v2290 = vsub.s32 0, %v2289
  %v2291 = vadd.s32 %v2286, 1
  %vm2292 = vcmp.gt.s32.totalorder %v2291, 0
  %v2293 = vsel %vm2292, %v2291, 0
  %v2294 = vshrl.u32 %v2293, 5
  %v2295 = vand.u32 %v2293, 31
  %v2296 = vsub.s32 32, %v2295
  %v2297 = vshrl.u32 683565275, %v2296
  %v2298 = vshll.u32 683565275, %v2295
  %v2299 = vshrl.u32 2475754826, %v2296
  %v2300 = vor.u32 %v2298, %v2299
  %v2301 = vshll.u32 2475754826, %v2295
  %v2302 = vshrl.u32 2131351028, %v2296
  %v2303 = vor.u32 %v2301, %v2302
  %v2304 = vshll.u32 2131351028, %v2295
  %v2305 = vshrl.u32 2102212464, %v2296
  %v2306 = vor.u32 %v2304, %v2305
  %v2307 = vshll.u32 2102212464, %v2295
  %v2308 = vshrl.u32 920167782, %v2296
  %v2309 = vor.u32 %v2307, %v2308
  %v2310 = vshll.u32 920167782, %v2295
  %v2311 = vshrl.u32 1326507024, %v2296
  %v2312 = vor.u32 %v2310, %v2311
  %vm2313 = vcmp.lt.s32.totalorder %v2294, 1
  %vm2314 = vcmp.lt.s32.totalorder %v2294, 2
  %vm2315 = vcmp.lt.s32.totalorder %v2294, 3
  %vm2316 = vcmp.lt.s32.totalorder %v2294, 4
  %v2317 = vsel %vm2313, %v2297, %v2300
  %v2318 = vsel %vm2316, %v2306, 2102212464
  %v2319 = vsel %vm2315, %v2303, %v2318
  %v2320 = vsel %vm2314, %v2317, %v2319
  %v2321 = vsel %vm2313, %v2300, %v2303
  %v2322 = vsel %vm2316, %v2309, 920167782
  %v2323 = vsel %vm2315, %v2306, %v2322
  %v2324 = vsel %vm2314, %v2321, %v2323
  %v2325 = vsel %vm2313, %v2303, %v2306
  %v2326 = vsel %vm2316, %v2312, 1326507024
  %v2327 = vsel %vm2315, %v2309, %v2326
  %v2328 = vsel %vm2314, %v2325, %v2327
  %v2329 = vshll.u32 %v2289, 8
  %v2330 = vand.u32 %v2329, 65535
  %v2331 = vshrl.u32 %v2329, 16
  %v2332 = vand.u32 %v2328, 65535
  %v2333 = vshrl.u32 %v2328, 16
  %v2334 = vmul.u32 %v2330, %v2332
  %v2335 = vmul.u32 %v2330, %v2333
  %v2336 = vmul.u32 %v2331, %v2332
  %v2337 = vmul.u32 %v2331, %v2333
  %v2338 = vshll.u32 %v2335, 16
  %v2339 = vshrl.u32 %v2335, 16
  %v2340 = vshll.u32 %v2336, 16
  %v2341 = vshrl.u32 %v2336, 16
  %vm2342 = vc.u32 %v2334, %v2338
  %v2343 = vsel %vm2342, 1, 0
  %v2344 = vadd.s32 %v2334, %v2338
  %v2345 = vadd.s32 %v2337, %v2343
  %vm2346 = vc.u32 %v2344, %v2340
  %v2347 = vsel %vm2346, 1, 0
  %v2348 = vadd.s32 %v2344, %v2340
  %v2349 = vadd.s32 %v2345, %v2347
  %v2350 = vadd.s32 %v2349, %v2339
  %v2351 = vadd.s32 %v2350, %v2341
  %v2352 = vand.u32 %v2329, 65535
  %v2353 = vshrl.u32 %v2329, 16
  %v2354 = vand.u32 %v2324, 65535
  %v2355 = vshrl.u32 %v2324, 16
  %v2356 = vmul.u32 %v2352, %v2354
  %v2357 = vmul.u32 %v2352, %v2355
  %v2358 = vmul.u32 %v2353, %v2354
  %v2359 = vmul.u32 %v2353, %v2355
  %v2360 = vshll.u32 %v2357, 16
  %v2361 = vshrl.u32 %v2357, 16
  %v2362 = vshll.u32 %v2358, 16
  %v2363 = vshrl.u32 %v2358, 16
  %vm2364 = vc.u32 %v2356, %v2360
  %v2365 = vsel %vm2364, 1, 0
  %v2366 = vadd.s32 %v2356, %v2360
  %v2367 = vadd.s32 %v2359, %v2365
  %vm2368 = vc.u32 %v2366, %v2362
  %v2369 = vsel %vm2368, 1, 0
  %v2370 = vadd.s32 %v2366, %v2362
  %v2371 = vadd.s32 %v2367, %v2369
  %v2372 = vadd.s32 %v2371, %v2361
  %v2373 = vadd.s32 %v2372, %v2363
  %v2374 = vmul.u32 %v2329, %v2320
  %v2375 = vadd.s32 %v2351, %v2370
  %vm2376 = vc.u32 %v2351, %v2370
  %v2377 = vadd.s32 %v2373, 1
  %v2378 = vsel %vm2376, %v2377, %v2373
  %v2379 = vadd.s32 %v2374, %v2378
  %v2380 = vadd.s32 %v2379, 536870912
  %v2381 = vshrl.u32 %v2380, 30
  %v2382 = vshll.u32 %v2381, 30
  %v2383 = vsub.s32 %v2379, %v2382
  %vm2384 = vcmp.lt.s32.totalorder %v2383, 0
  %v2385 = vsub.s32 0, %v2383
  %v2386 = vsel %vm2384, %v2385, %v2383
  %v2387 = vclz %v2386
  %v2388 = vsub.s32 %v2387, 2
  %vm2389 = vcmp.gt.s32.totalorder 0, %v2388
  %v2390 = vsel %vm2389, 0, %v2388
  %v2391 = vsub.s32 32, %v2390
  %v2392 = vshll.u32 %v2383, %v2390
  %v2393 = vshrl.u32 %v2375, %v2391
  %v2394 = vor.u32 %v2392, %v2393
  %v2395 = vsub.s32 4294967266, %v2390
  %v2396 = vadd.s32 %v2395, 127
  %v2397 = vshll.u32 %v2396, 23
  %v2398 = vor.u32 4788187, %v2397
  %v2399 = vand.u32 2147483647, %v2398
  %v2401 = vcvt.s32.f32 %v2394
  %v2402 = vmul.f32 %v2401, %v2399
  %v2403 = vxor.u32 %v2402, 2147483648
  %v2404 = vsel %vm2283, %v2403, %v2402
  %v2405 = vsub.s32 4, %v2381
  %v2406 = vsel %vm2283, %v2405, %v2381
  %v2407 = vsel %vm2282, %v276, %v2404
  %v2408 = vsel %vm2282, 0, %v2406
  %v2409 = vmul.f32 %v2407, %v2407
  %v2410 = vmul.f32 %v2409, -0.001358992
  %v2411 = vadd.f32 %v2410, 0.041655596
  %v2412 = vmul.f32 %v2409, %v2411
  %v2413 = vadd.f32 %v2412, -0.4999988
  %v2414 = vmul.f32 %v2409, %v2413
  %v2415 = vadd.f32 1.0, %v2414
  %v2416 = vmul.f32 %v2407, %v2407
  %v2417 = vmul.f32 %v2416, -0.00019511016
  %v2418 = vadd.f32 %v2417, 0.008332121
  %v2419 = vmul.f32 %v2416, %v2418
  %v2420 = vadd.f32 %v2419, -0.16666654
  %v2421 = vmul.f32 %v2416, %v2420
  %v2422 = vadd.f32 %v2421, 1.0
  %v2423 = vmul.f32 %v2422, %v2407
  %vm2424 = vweird.f32 %v276
  %v2425 = vand.u32 %v2408, 3
  %vm2426 = vcmp.lt.s32.totalorder %v2425, 2
  %vm2427 = vcmp.eq.s32.totalorder %v2425, 0
  %v2428 = vxor.u32 %v2423, 2147483648
  %v2429 = vsel %vm2427, %v2415, %v2428
  %vm2430 = vcmp.eq.s32.totalorder %v2425, 2
  %v2431 = vxor.u32 %v2415, 2147483648
  %v2432 = vsel %vm2430, %v2431, %v2423
  %v2433 = vsel %vm2426, %v2429, %v2432
  %v2434 = vsel %vm2424, nan, %v2433
  %v2435 = vand.u32 2147483647, %v277
  %vm2436 = vcmp.le.f32.partialorder %v2435, 0.7853982
  %vm2437 = vcmp.lt.s32.totalorder %v277, 0
  %v2438 = vand.u32 %v277, 2139095040
  %v2439 = vshrl.u32 %v2438, 23
  %v2440 = vsub.s32 %v2439, 127
  %v2441 = vand.u32 2147483647, %v277
  %v2442 = vand.u32 %v2441, 8388607
  %v2443 = vor.u32 %v2442, 8388608
  %v2444 = vsub.s32 0, %v2443
  %v2445 = vadd.s32 %v2440, 1
  %vm2446 = vcmp.gt.s32.totalorder %v2445, 0
  %v2447 = vsel %vm2446, %v2445, 0
  %v2448 = vshrl.u32 %v2447, 5
  %v2449 = vand.u32 %v2447, 31
  %v2450 = vsub.s32 32, %v2449
  %v2451 = vshrl.u32 683565275, %v2450
  %v2452 = vshll.u32 683565275, %v2449
  %v2453 = vshrl.u32 2475754826, %v2450
  %v2454 = vor.u32 %v2452, %v2453
  %v2455 = vshll.u32 2475754826, %v2449
  %v2456 = vshrl.u32 2131351028, %v2450
  %v2457 = vor.u32 %v2455, %v2456
  %v2458 = vshll.u32 2131351028, %v2449
  %v2459 = vshrl.u32 2102212464, %v2450
  %v2460 = vor.u32 %v2458, %v2459
  %v2461 = vshll.u32 2102212464, %v2449
  %v2462 = vshrl.u32 920167782, %v2450
  %v2463 = vor.u32 %v2461, %v2462
  %v2464 = vshll.u32 920167782, %v2449
  %v2465 = vshrl.u32 1326507024, %v2450
  %v2466 = vor.u32 %v2464, %v2465
  %vm2467 = vcmp.lt.s32.totalorder %v2448, 1
  %vm2468 = vcmp.lt.s32.totalorder %v2448, 2
  %vm2469 = vcmp.lt.s32.totalorder %v2448, 3
  %vm2470 = vcmp.lt.s32.totalorder %v2448, 4
  %v2471 = vsel %vm2467, %v2451, %v2454
  %v2472 = vsel %vm2470, %v2460, 2102212464
  %v2473 = vsel %vm2469, %v2457, %v2472
  %v2474 = vsel %vm2468, %v2471, %v2473
  %v2475 = vsel %vm2467, %v2454, %v2457
  %v2476 = vsel %vm2470, %v2463, 920167782
  %v2477 = vsel %vm2469, %v2460, %v2476
  %v2478 = vsel %vm2468, %v2475, %v2477
  %v2479 = vsel %vm2467, %v2457, %v2460
  %v2480 = vsel %vm2470, %v2466, 1326507024
  %v2481 = vsel %vm2469, %v2463, %v2480
  %v2482 = vsel %vm2468, %v2479, %v2481
  %v2483 = vshll.u32 %v2443, 8
  %v2484 = vand.u32 %v2483, 65535
  %v2485 = vshrl.u32 %v2483, 16
  %v2486 = vand.u32 %v2482, 65535
  %v2487 = vshrl.u32 %v2482, 16
  %v2488 = vmul.u32 %v2484, %v2486
  %v2489 = vmul.u32 %v2484, %v2487
  %v2490 = vmul.u32 %v2485, %v2486
  %v2491 = vmul.u32 %v2485, %v2487
  %v2492 = vshll.u32 %v2489, 16
  %v2493 = vshrl.u32 %v2489, 16
  %v2494 = vshll.u32 %v2490, 16
  %v2495 = vshrl.u32 %v2490, 16
  %vm2496 = vc.u32 %v2488, %v2492
  %v2497 = vsel %vm2496, 1, 0
  %v2498 = vadd.s32 %v2488, %v2492
  %v2499 = vadd.s32 %v2491, %v2497
  %vm2500 = vc.u32 %v2498, %v2494
  %v2501 = vsel %vm2500, 1, 0
  %v2502 = vadd.s32 %v2498, %v2494
  %v2503 = vadd.s32 %v2499, %v2501
  %v2504 = vadd.s32 %v2503, %v2493
  %v2505 = vadd.s32 %v2504, %v2495
  %v2506 = vand.u32 %v2483, 65535
  %v2507 = vshrl.u32 %v2483, 16
  %v2508 = vand.u32 %v2478, 65535
  %v2509 = vshrl.u32 %v2478, 16
  %v2510 = vmul.u32 %v2506, %v2508
  %v2511 = vmul.u32 %v2506, %v2509
  %v2512 = vmul.u32 %v2507, %v2508
  %v2513 = vmul.u32 %v2507, %v2509
  %v2514 = vshll.u32 %v2511, 16
  %v2515 = vshrl.u32 %v2511, 16
  %v2516 = vshll.u32 %v2512, 16
  %v2517 = vshrl.u32 %v2512, 16
  %vm2518 = vc.u32 %v2510, %v2514
  %v2519 = vsel %vm2518, 1, 0
  %v2520 = vadd.s32 %v2510, %v2514
  %v2521 = vadd.s32 %v2513, %v2519
  %vm2522 = vc.u32 %v2520, %v2516
  %v2523 = vsel %vm2522, 1, 0
  %v2524 = vadd.s32 %v2520, %v2516
  %v2525 = vadd.s32 %v2521, %v2523
  %v2526 = vadd.s32 %v2525, %v2515
  %v2527 = vadd.s32 %v2526, %v2517
  %v2528 = vmul.u32 %v2483, %v2474
  %v2529 = vadd.s32 %v2505, %v2524
  %vm2530 = vc.u32 %v2505, %v2524
  %v2531 = vadd.s32 %v2527, 1
  %v2532 = vsel %vm2530, %v2531, %v2527
  %v2533 = vadd.s32 %v2528, %v2532
  %v2534 = vadd.s32 %v2533, 536870912
  %v2535 = vshrl.u32 %v2534, 30
  %v2536 = vshll.u32 %v2535, 30
  %v2537 = vsub.s32 %v2533, %v2536
  %vm2538 = vcmp.lt.s32.totalorder %v2537, 0
  %v2539 = vsub.s32 0, %v2537
  %v2540 = vsel %vm2538, %v2539, %v2537
  %v2541 = vclz %v2540
  %v2542 = vsub.s32 %v2541, 2
  %vm2543 = vcmp.gt.s32.totalorder 0, %v2542
  %v2544 = vsel %vm2543, 0, %v2542
  %v2545 = vsub.s32 32, %v2544
  %v2546 = vshll.u32 %v2537, %v2544
  %v2547 = vshrl.u32 %v2529, %v2545
  %v2548 = vor.u32 %v2546, %v2547
  %v2549 = vsub.s32 4294967266, %v2544
  %v2550 = vadd.s32 %v2549, 127
  %v2551 = vshll.u32 %v2550, 23
  %v2552 = vor.u32 4788187, %v2551
  %v2553 = vand.u32 2147483647, %v2552
  %v2555 = vcvt.s32.f32 %v2548
  %v2556 = vmul.f32 %v2555, %v2553
  %v2557 = vxor.u32 %v2556, 2147483648
  %v2558 = vsel %vm2437, %v2557, %v2556
  %v2559 = vsub.s32 4, %v2535
  %v2560 = vsel %vm2437, %v2559, %v2535
  %v2561 = vsel %vm2436, %v277, %v2558
  %v2562 = vsel %vm2436, 0, %v2560
  %v2563 = vmul.f32 %v2561, %v2561
  %v2564 = vmul.f32 %v2563, -0.001358992
  %v2565 = vadd.f32 %v2564, 0.041655596
  %v2566 = vmul.f32 %v2563, %v2565
  %v2567 = vadd.f32 %v2566, -0.4999988
  %v2568 = vmul.f32 %v2563, %v2567
  %v2569 = vadd.f32 1.0, %v2568
  %v2570 = vmul.f32 %v2561, %v2561
  %v2571 = vmul.f32 %v2570, -0.00019511016
  %v2572 = vadd.f32 %v2571, 0.008332121
  %v2573 = vmul.f32 %v2570, %v2572
  %v2574 = vadd.f32 %v2573, -0.16666654
  %v2575 = vmul.f32 %v2570, %v2574
  %v2576 = vadd.f32 %v2575, 1.0
  %v2577 = vmul.f32 %v2576, %v2561
  %vm2578 = vweird.f32 %v277
  %v2579 = vand.u32 %v2562, 3
  %vm2580 = vcmp.lt.s32.totalorder %v2579, 2
  %vm2581 = vcmp.eq.s32.totalorder %v2579, 0
  %v2582 = vxor.u32 %v2577, 2147483648
  %v2583 = vsel %vm2581, %v2569, %v2582
  %vm2584 = vcmp.eq.s32.totalorder %v2579, 2
  %v2585 = vxor.u32 %v2569, 2147483648
  %v2586 = vsel %vm2584, %v2585, %v2577
  %v2587 = vsel %vm2580, %v2583, %v2586
  %v2588 = vsel %vm2578, nan, %v2587
  %v2589 = vand.u32 2147483647, %v278
  %vm2590 = vcmp.le.f32.partialorder %v2589, 0.7853982
  %vm2591 = vcmp.lt.s32.totalorder %v278, 0
  %v2592 = vand.u32 %v278, 2139095040
  %v2593 = vshrl.u32 %v2592, 23
  %v2594 = vsub.s32 %v2593, 127
  %v2595 = vand.u32 2147483647, %v278
  %v2596 = vand.u32 %v2595, 8388607
  %v2597 = vor.u32 %v2596, 8388608
  %v2598 = vsub.s32 0, %v2597
  %v2599 = vadd.s32 %v2594, 1
  %vm2600 = vcmp.gt.s32.totalorder %v2599, 0
  %v2601 = vsel %vm2600, %v2599, 0
  %v2602 = vshrl.u32 %v2601, 5
  %v2603 = vand.u32 %v2601, 31
  %v2604 = vsub.s32 32, %v2603
  %v2605 = vshrl.u32 683565275, %v2604
  %v2606 = vshll.u32 683565275, %v2603
  %v2607 = vshrl.u32 2475754826, %v2604
  %v2608 = vor.u32 %v2606, %v2607
  %v2609 = vshll.u32 2475754826, %v2603
  %v2610 = vshrl.u32 2131351028, %v2604
  %v2611 = vor.u32 %v2609, %v2610
  %v2612 = vshll.u32 2131351028, %v2603
  %v2613 = vshrl.u32 2102212464, %v2604
  %v2614 = vor.u32 %v2612, %v2613
  %v2615 = vshll.u32 2102212464, %v2603
  %v2616 = vshrl.u32 920167782, %v2604
  %v2617 = vor.u32 %v2615, %v2616
  %v2618 = vshll.u32 920167782, %v2603
  %v2619 = vshrl.u32 1326507024, %v2604
  %v2620 = vor.u32 %v2618, %v2619
  %vm2621 = vcmp.lt.s32.totalorder %v2602, 1
  %vm2622 = vcmp.lt.s32.totalorder %v2602, 2
  %vm2623 = vcmp.lt.s32.totalorder %v2602, 3
  %vm2624 = vcmp.lt.s32.totalorder %v2602, 4
  %v2625 = vsel %vm2621, %v2605, %v2608
  %v2626 = vsel %vm2624, %v2614, 2102212464
  %v2627 = vsel %vm2623, %v2611, %v2626
  %v2628 = vsel %vm2622, %v2625, %v2627
  %v2629 = vsel %vm2621, %v2608, %v2611
  %v2630 = vsel %vm2624, %v2617, 920167782
  %v2631 = vsel %vm2623, %v2614, %v2630
  %v2632 = vsel %vm2622, %v2629, %v2631
  %v2633 = vsel %vm2621, %v2611, %v2614
  %v2634 = vsel %vm2624, %v2620, 1326507024
  %v2635 = vsel %vm2623, %v2617, %v2634
  %v2636 = vsel %vm2622, %v2633, %v2635
  %v2637 = vshll.u32 %v2597, 8
  %v2638 = vand.u32 %v2637, 65535
  %v2639 = vshrl.u32 %v2637, 16
  %v2640 = vand.u32 %v2636, 65535
  %v2641 = vshrl.u32 %v2636, 16
  %v2642 = vmul.u32 %v2638, %v2640
  %v2643 = vmul.u32 %v2638, %v2641
  %v2644 = vmul.u32 %v2639, %v2640
  %v2645 = vmul.u32 %v2639, %v2641
  %v2646 = vshll.u32 %v2643, 16
  %v2647 = vshrl.u32 %v2643, 16
  %v2648 = vshll.u32 %v2644, 16
  %v2649 = vshrl.u32 %v2644, 16
  %vm2650 = vc.u32 %v2642, %v2646
  %v2651 = vsel %vm2650, 1, 0
  %v2652 = vadd.s32 %v2642, %v2646
  %v2653 = vadd.s32 %v2645, %v2651
  %vm2654 = vc.u32 %v2652, %v2648
  %v2655 = vsel %vm2654, 1, 0
  %v2656 = vadd.s32 %v2652, %v2648
  %v2657 = vadd.s32 %v2653, %v2655
  %v2658 = vadd.s32 %v2657, %v2647
  %v2659 = vadd.s32 %v2658, %v2649
  %v2660 = vand.u32 %v2637, 65535
  %v2661 = vshrl.u32 %v2637, 16
  %v2662 = vand.u32 %v2632, 65535
  %v2663 = vshrl.u32 %v2632, 16
  %v2664 = vmul.u32 %v2660, %v2662
  %v2665 = vmul.u32 %v2660, %v2663
  %v2666 = vmul.u32 %v2661, %v2662
  %v2667 = vmul.u32 %v2661, %v2663
  %v2668 = vshll.u32 %v2665, 16
  %v2669 = vshrl.u32 %v2665, 16
  %v2670 = vshll.u32 %v2666, 16
  %v2671 = vshrl.u32 %v2666, 16
  %vm2672 = vc.u32 %v2664, %v2668
  %v2673 = vsel %vm2672, 1, 0
  %v2674 = vadd.s32 %v2664, %v2668
  %v2675 = vadd.s32 %v2667, %v2673
  %vm2676 = vc.u32 %v2674, %v2670
  %v2677 = vsel %vm2676, 1, 0
  %v2678 = vadd.s32 %v2674, %v2670
  %v2679 = vadd.s32 %v2675, %v2677
  %v2680 = vadd.s32 %v2679, %v2669
  %v2681 = vadd.s32 %v2680, %v2671
  %v2682 = vmul.u32 %v2637, %v2628
  %v2683 = vadd.s32 %v2659, %v2678
  %vm2684 = vc.u32 %v2659, %v2678
  %v2685 = vadd.s32 %v2681, 1
  %v2686 = vsel %vm2684, %v2685, %v2681
  %v2687 = vadd.s32 %v2682, %v2686
  %v2688 = vadd.s32 %v2687, 536870912
  %v2689 = vshrl.u32 %v2688, 30
  %v2690 = vshll.u32 %v2689, 30
  %v2691 = vsub.s32 %v2687, %v2690
  %vm2692 = vcmp.lt.s32.totalorder %v2691, 0
  %v2693 = vsub.s32 0, %v2691
  %v2694 = vsel %vm2692, %v2693, %v2691
  %v2695 = vclz %v2694
  %v2696 = vsub.s32 %v2695, 2
  %vm2697 = vcmp.gt.s32.totalorder 0, %v2696
  %v2698 = vsel %vm2697, 0, %v2696
  %v2699 = vsub.s32 32, %v2698
  %v2700 = vshll.u32 %v2691, %v2698
  %v2701 = vshrl.u32 %v2683, %v2699
  %v2702 = vor.u32 %v2700, %v2701
  %v2703 = vsub.s32 4294967266, %v2698
  %v2704 = vadd.s32 %v2703, 127
  %v2705 = vshll.u32 %v2704, 23
  %v2706 = vor.u32 4788187, %v2705
  %v2707 = vand.u32 2147483647, %v2706
  %v2709 = vcvt.s32.f32 %v2702
  %v2710 = vmul.f32 %v2709, %v2707
  %v2711 = vxor.u32 %v2710, 2147483648
  %v2712 = vsel %vm2591, %v2711, %v2710
  %v2713 = vsub.s32 4, %v2689
  %v2714 = vsel %vm2591, %v2713, %v2689
  %v2715 = vsel %vm2590, %v278, %v2712
  %v2716 = vsel %vm2590, 0, %v2714
  %v2717 = vmul.f32 %v2715, %v2715
  %v2718 = vmul.f32 %v2717, -0.001358992
  %v2719 = vadd.f32 %v2718, 0.041655596
  %v2720 = vmul.f32 %v2717, %v2719
  %v2721 = vadd.f32 %v2720, -0.4999988
  %v2722 = vmul.f32 %v2717, %v2721
  %v2723 = vadd.f32 1.0, %v2722
  %v2724 = vmul.f32 %v2715, %v2715
  %v2725 = vmul.f32 %v2724, -0.00019511016
  %v2726 = vadd.f32 %v2725, 0.008332121
  %v2727 = vmul.f32 %v2724, %v2726
  %v2728 = vadd.f32 %v2727, -0.16666654
  %v2729 = vmul.f32 %v2724, %v2728
  %v2730 = vadd.f32 %v2729, 1.0
  %v2731 = vmul.f32 %v2730, %v2715
  %vm2732 = vweird.f32 %v278
  %v2733 = vand.u32 %v2716, 3
  %vm2734 = vcmp.lt.s32.totalorder %v2733, 2
  %vm2735 = vcmp.eq.s32.totalorder %v2733, 0
  %v2736 = vxor.u32 %v2731, 2147483648
  %v2737 = vsel %vm2735, %v2723, %v2736
  %vm2738 = vcmp.eq.s32.totalorder %v2733, 2
  %v2739 = vxor.u32 %v2723, 2147483648
  %v2740 = vsel %vm2738, %v2739, %v2731
  %v2741 = vsel %vm2734, %v2737, %v2740
  %v2742 = vsel %vm2732, nan, %v2741
  %v2743 = vld [vmem:[%s3] sm:$0xf]
  %v2745 = vperm.slane %v2743, 0
  %v2746 = vperm.slane %v2743, 1
  %v2747 = vperm.slane %v2743, 2
  %v2748 = vperm.slane %v2743, 3
  %v2753 = vmul.f32 %v432, %v2745
  %v2754 = vmul.f32 %v586, %v2746
  %v2755 = vmul.f32 %v740, %v2747
  %v2756 = vmul.f32 %v894, %v2748
  %v2757 = vmul.f32 %v1048, %v2745
  %v2758 = vmul.f32 %v1202, %v2746
  %v2759 = vmul.f32 %v1356, %v2747
  %v2760 = vmul.f32 %v1510, %v2748
  %v2761 = vmul.f32 %v1664, %v2745
  %v2762 = vmul.f32 %v1818, %v2746
  %v2763 = vmul.f32 %v1972, %v2747
  %v2764 = vmul.f32 %v2126, %v2748
  %v2765 = vmul.f32 %v2280, %v2745
  %v2766 = vmul.f32 %v2434, %v2746
  %v2767 = vmul.f32 %v2588, %v2747
  %v2768 = vmul.f32 %v2742, %v2748
  %v2769 = vadd.f32 %v2753, %v2754
  %2770 = vadd.xlane.f32.xlu0 %v2769
  %v2771 = vpop.xlane.xlu0 %2770
  %v2772 = vadd.f32 %v2757, %v2758
  %2773 = vadd.xlane.f32.xlu0 %v2772
  %v2774 = vpop.xlane.xlu0 %2773
  %v2775 = vadd.f32 %v2761, %v2762
  %2776 = vadd.xlane.f32.xlu0 %v2775
  %v2777 = vpop.xlane.xlu0 %2776
  %v2778 = vadd.f32 %v2765, %v2766
  %2779 = vadd.xlane.f32.xlu0 %v2778
  %v2780 = vpop.xlane.xlu0 %2779
  %v2781 = vadd.f32 %v2755, %v2756
  %2782 = vadd.xlane.f32.xlu0 %v2781
  %v2783 = vpop.xlane.xlu0 %2782
  %v2784 = vadd.f32 %v2759, %v2760
  %2785 = vadd.xlane.f32.xlu0 %v2784
  %v2786 = vpop.xlane.xlu0 %2785
  %v2787 = vadd.f32 %v2763, %v2764
  %2788 = vadd.xlane.f32.xlu0 %v2787
  %v2789 = vpop.xlane.xlu0 %2788
  %v2790 = vadd.f32 %v2767, %v2768
  %2791 = vadd.xlane.f32.xlu0 %v2790
  %v2792 = vpop.xlane.xlu0 %2791
  %vm2793 = vcmask 7168
  %v2794 = vsel %vm2793, %v2771, %v2783
  %v2795 = vsel %vm2793, %v2774, %v2786
  %v2796 = vsel %vm2793, %v2777, %v2789
  %v2797 = vsel %vm2793, %v2780, %v2792
  %vm2798 = vcmask 15360
  %2799 = vst.msk [vmem:[%s4] sm:$0xff] %vm2798, %v2794
  %2800 = vst.msk [vmem:[%s4 + $0x8] sm:$0xff] %vm2798, %v2795
  %2801 = vst.msk [vmem:[%s4 + $0x10] sm:$0xff] %vm2798, %v2796
  %2802 = vst.msk [vmem:[%s4 + $0x18] sm:$0xff] %vm2798, %v2797
  // Predicated region
  $region18: #{tpu_custom_call.1} parent=0 // pred_check
    _
  $region19: #{tpu_custom_call.1} parent=0 // pred_check_branch
    %2804 = sbr.rel (0) target = $region21
  $region20: #{tpu_custom_call.1} parent=0 // pred_region
    _
  $region21: #{tpu_custom_call.1} parent=0 // pred_fallthru
    _
  // Predicated region
  $region22: #{tpu_custom_call.1} parent=0 // pred_check
    _
  $region23: #{tpu_custom_call.1} parent=0 // pred_check_branch
    %2806 = sbr.rel (0) target = $region25
  $region24: #{tpu_custom_call.1} parent=0 // pred_region
    _
  $region25: #{tpu_custom_call.1} parent=0 // pred_fallthru
    _

</llo_original>
